<compile_context>
chip_gen: v7x
topology: tpu7x:2x2x1
jax: 0.10.0
libtpu: 0.0.40
codegen_flags: <defaults>
</compile_context>

<pallas_src>
import functools

import jax
import jax.numpy as jnp
from jax import lax
from jax.experimental import pallas as pl
from jax.experimental.pallas import tpu as pltpu


NEG_BIG = -1e30                            # "masked row" score for padding
_VMEM_LIMIT = 48 * 1024 * 1024             # < v7x's 64 MiB physical VMEM
_NT_DIMS = (((1,), (1,)), ((), ()))        # A[m,k] . B[n,k] -> [m,n]  (q.k^T)
_TN_DIMS = (((0,), (0,)), ((), ()))        # A[k,m] . B[k,n] -> [m,n]  (grad-style)


def _round_up(x, m):
    return ((x + m - 1) // m) * m


def _cdiv(a, b):
    return (a + b - 1) // b


# ---------------------------------------------------------------------------
# Pass 1: online global (max, sum-exp) of the fused attention scores.
# ---------------------------------------------------------------------------
def _stats_kernel(nf_ref, bias_ref, u8_ref, m_ref, l_ref):
    @pl.when(pl.program_id(1) == 0)
    def _init():
        m_ref[...] = jnp.full(m_ref.shape, NEG_BIG, jnp.float32)
        l_ref[...] = jnp.zeros(l_ref.shape, jnp.float32)

    # Lane-major scores: s8[j, t] = dot(nf[t, :], u) + bias[t]  (8 equal rows).
    s8 = lax.dot_general(u8_ref[...], nf_ref[...], _NT_DIMS,
                         preferred_element_type=jnp.float32) + bias_ref[...]

    m_old = m_ref[0:1, 0:1]
    l_old = l_ref[0:1, 0:1]
    t_max = jnp.max(jnp.max(s8, axis=1, keepdims=True), axis=0, keepdims=True)
    m_new = jnp.maximum(m_old, t_max)
    p = jnp.exp(s8 - m_new)
    t_sum = jnp.sum(jnp.sum(p, axis=1, keepdims=True),
                    axis=0, keepdims=True) * 0.125            # 8 identical rows
    l_new = l_old * jnp.exp(m_old - m_new) + t_sum
    m_ref[...] = jnp.broadcast_to(m_new, m_ref.shape)
    l_ref[...] = jnp.broadcast_to(l_new, l_ref.shape)


# ---------------------------------------------------------------------------
# Pass 2: re-stream nf, recompute scores, apply attention + residual.
# ---------------------------------------------------------------------------
def _apply_kernel(nf_ref, bias_ref, stats_ref, u8_ref, w1_ref, b1_ref, out_ref):
    nf = nf_ref[...]                                           # [T, F] bf16
    m = stats_ref[0]                                           # global max (SMEM)
    inv_l = stats_ref[1]                                       # 1 / sum-exp (SMEM)

    # Lane-major attention weights: exp/mul on T/128 vregs instead of T/8.
    s8 = lax.dot_general(u8_ref[...], nf, _NT_DIMS,
                         preferred_element_type=jnp.float32) + bias_ref[...]
    attn8 = jnp.exp(s8 - m) * inv_l                            # [8, T]

    # Lane -> row relayout via the MXU: attn_rep[t, d] = attn[t].
    eighth = jnp.full(u8_ref.shape, 0.125, jnp.float32)        # [8, F]
    attn_rep = lax.dot_general(attn8, eighth, _TN_DIMS,
                               preferred_element_type=jnp.float32)   # [T, F]

    transformed = jnp.dot(nf, w1_ref[...],
                          preferred_element_type=jnp.float32) + b1_ref[...]
    out_ref[...] = (attn_rep * transformed
                    + nf.astype(jnp.float32)).astype(out_ref.dtype)


# ---------------------------------------------------------------------------
# Small/medium graphs: everything VMEM-resident in a single call.
# ---------------------------------------------------------------------------
def _fused_kernel(nf_ref, bias_ref, u8_ref, w1_ref, b1_ref, out_ref):
    nf = nf_ref[...]                                           # [Np, F] bf16
    s8 = lax.dot_general(u8_ref[...], nf, _NT_DIMS,
                         preferred_element_type=jnp.float32) + bias_ref[...]
    m = jnp.max(jnp.max(s8, axis=1, keepdims=True), axis=0, keepdims=True)
    p8 = jnp.exp(s8 - m)
    l = jnp.sum(jnp.sum(p8, axis=1, keepdims=True),
                axis=0, keepdims=True) * 0.125
    attn8 = p8 * (1.0 / l)

    eighth = jnp.full(u8_ref.shape, 0.125, jnp.float32)
    attn_rep = lax.dot_general(attn8, eighth, _TN_DIMS,
                               preferred_element_type=jnp.float32)
    transformed = jnp.dot(nf, w1_ref[...],
                          preferred_element_type=jnp.float32) + b1_ref[...]
    out_ref[...] = (attn_rep * transformed
                    + nf.astype(jnp.float32)).astype(out_ref.dtype)


# ---------------------------------------------------------------------------
# Wrapper
# ---------------------------------------------------------------------------
def attention_layer_forward(node_features, diagram_vector, batch, params, *,
                            tile_n=8192, fast_path_rows=8192):
    """node_features [N, F], diagram_vector [G, D], batch [N] int, F == D.

    tile_n: rows per grid step on the streaming path (8192 ~ 2 MiB of bf16
        features per step keeps the ~0.35 us step overhead <~20%; 16384 on v7x
        if VMEM allows).  fast_path_rows: graphs with at most this many
        (128-padded) rows use the fused single-call VMEM-resident kernel.
    """
    w1 = params["w1"].astype(jnp.float32)                      # [F, D] (in, out)
    b1 = params["b1"].reshape(1, -1).astype(jnp.float32)       # [1, D]
    w2 = params["w2"].reshape(-1, 1).astype(jnp.float32)       # [D, 1]
    b2 = params["b2"].reshape(()).astype(jnp.float32)          # scalar

    n, f = node_features.shape
    g, d = diagram_vector.shape
    assert w1.shape == (f, d)
    assert f == d, "residual `attended + node_features` requires F == D"

    # Fused score path: scores = nf @ u + row_bias  (review #3/#9).
    u = (w1 @ w2).reshape(-1)                                  # [F]
    c = (b1 @ w2).reshape(()) + b2                             # scalar
    row_bias = ((diagram_vector.astype(jnp.float32) @ w2).reshape(-1) + c)[batch]

    nf = node_features.astype(jnp.bfloat16)                    # dominant stream
    u8 = jnp.broadcast_to(u.astype(jnp.bfloat16), (8, f))      # MXU "query" rows
    w1_bf = w1.astype(jnp.bfloat16)
    out_dtype = node_features.dtype

    def compiler(dims):
        return pltpu.CompilerParams(dimension_semantics=dims,
                                    vmem_limit_bytes=_VMEM_LIMIT)

    def pad_inputs(n_pad):
        pad = n_pad - n
        nf_p, bias_p = nf, row_bias
        if pad:
            nf_p = jnp.concatenate([nf_p, jnp.zeros((pad, f), jnp.bfloat16)], 0)
            # Padded rows get a huge negative bias -> attn exactly 0, no masking
            # branches needed inside the kernels.
            bias_p = jnp.concatenate(
                [bias_p, jnp.full((pad,), NEG_BIG, jnp.float32)], 0)
        # (1, N) keeps the per-row bias lane-dense (never (N, 1) on TPU).
        return nf_p, bias_p.reshape(1, n_pad)

    # ---- small/medium graphs: single fused call (review #7) ---------------
    if _round_up(max(n, 1), 128) <= fast_path_rows:
        n_pad = _round_up(max(n, 1), 128)
        nf_p, bias2d = pad_inputs(n_pad)
        out = pl.pallas_call(
            _fused_kernel,
            out_shape=jax.ShapeDtypeStruct((n_pad, f), out_dtype),
            grid_spec=pltpu.PrefetchScalarGridSpec(
                num_scalar_prefetch=0,
                grid=(1,),
                in_specs=[
                    pl.BlockSpec((n_pad, f), lambda i: (0, 0)),   # node feats
                    pl.BlockSpec((1, n_pad), lambda i: (0, 0)),   # per-row bias
                    pl.BlockSpec((8, f), lambda i: (0, 0)),       # u (8 copies)
                    pl.BlockSpec((f, f), lambda i: (0, 0)),       # W1
                    pl.BlockSpec((1, f), lambda i: (0, 0)),       # b1
                ],
                out_specs=pl.BlockSpec((n_pad, f), lambda i: (0, 0)),
            ),
            compiler_params=compiler(("arbitrary",)),
        )(nf_p, bias2d, u8, w1_bf, b1)
        return out[:n]

    # ---- large graphs: two streaming passes over big tiles -----------------
    tile = min(max(128, _round_up(tile_n, 128)), _round_up(n, 128))
    num_tiles = _cdiv(n, tile)
    num_splits = 2 if num_tiles >= 2 else 1         # v7x megacore (review #6)
    tiles_per_split = _cdiv(num_tiles, num_splits)
    total_tiles = num_splits * tiles_per_split
    n_pad = total_tiles * tile
    nf_p, bias2d = pad_inputs(n_pad)

    # pass 1: per-split online (max, sum-exp) over the fused scores.
    m_parts, l_parts = pl.pallas_call(
        _stats_kernel,
        out_shape=(jax.ShapeDtypeStruct((num_splits * 8, 128), jnp.float32),
                   jax.ShapeDtypeStruct((num_splits * 8, 128), jnp.float32)),
        grid_spec=pltpu.PrefetchScalarGridSpec(
            num_scalar_prefetch=0,
            grid=(num_splits, tiles_per_split),
            in_specs=[
                pl.BlockSpec((tile, f),
                             lambda c, i: (c * tiles_per_split + i, 0)),
                pl.BlockSpec((1, tile),
                             lambda c, i: (0, c * tiles_per_split + i)),
                pl.BlockSpec((8, f), lambda c, i: (0, 0)),
            ],
            out_specs=[
                pl.BlockSpec((8, 128), lambda c, i: (c, 0)),
                pl.BlockSpec((8, 128), lambda c, i: (c, 0)),
            ],
        ),
        compiler_params=compiler(("parallel", "arbitrary")),
    )(nf_p, bias2d, u8)

    # Merge the per-split partials (a handful of scalar ops in XLA).
    m_c = m_parts[0::8, 0]
    l_c = l_parts[0::8, 0]
    m_g = jnp.max(m_c)
    l_g = jnp.sum(l_c * jnp.exp(m_c - m_g))
    stats = jnp.stack([m_g, 1.0 / l_g]).astype(jnp.float32)    # [m, 1/l] -> SMEM

    # pass 2: re-stream nf, recompute scores, apply attention + residual.
    out = pl.pallas_call(
        _apply_kernel,
        out_shape=jax.ShapeDtypeStruct((n_pad, f), out_dtype),
        grid_spec=pltpu.PrefetchScalarGridSpec(
            num_scalar_prefetch=0,
            grid=(total_tiles,),
            in_specs=[
                pl.BlockSpec((tile, f), lambda i: (i, 0)),      # node feats
                pl.BlockSpec((1, tile), lambda i: (0, i)),      # per-row bias
                pl.BlockSpec(memory_space=pltpu.MemorySpace.SMEM),  # [m, 1/l]
                pl.BlockSpec((8, f), lambda i: (0, 0)),         # u (8 copies)
                pl.BlockSpec((f, f), lambda i: (0, 0)),         # W1
                pl.BlockSpec((1, f), lambda i: (0, 0)),         # b1
            ],
            out_specs=pl.BlockSpec((tile, f), lambda i: (i, 0)),
        ),
        compiler_params=compiler(("parallel",)),
    )(nf_p, bias2d, stats, u8, w1_bf, b1)
    return out[:n]


# ---------------------------------------------------------------------------
# Init + pure-JAX reference
# ---------------------------------------------------------------------------
def init_params(key, node_feature_size, diagram_feature_size):
    """Deterministic init mimicking nn.Linear (uniform +/- 1/sqrt(fan_in))."""
    k1, k2, k3, k4 = jax.random.split(key, 4)
    lim1 = 1.0 / jnp.sqrt(jnp.float32(node_feature_size))
    lim2 = 1.0 / jnp.sqrt(jnp.float32(diagram_feature_size))
    # Weights stored pre-transposed: [in, out].
    w1 = jax.random.uniform(k1, (node_feature_size, diagram_feature_size),
                            jnp.float32, -lim1, lim1)
    b1 = jax.random.uniform(k2, (1, diagram_feature_size), jnp.float32, -lim1, lim1)
    w2 = jax.random.uniform(k3, (diagram_feature_size, 1), jnp.float32, -lim2, lim2)
    b2 = jax.random.uniform(k4, (1, 1), jnp.float32, -lim2, lim2)
    return {"w1": w1, "b1": b1, "w2": w2, "b2": b2}


def reference_forward(node_features, diagram_vector, batch, params):
    transformed = node_features @ params["w1"] + params["b1"].reshape(1, -1)
    scores = ((transformed + diagram_vector[batch]) @ params["w2"].reshape(-1, 1)
              + params["b2"].reshape(1, 1))
    attn = jax.nn.softmax(scores, axis=0)
    return attn * transformed + node_features


if __name__ == "__main__":
    # Small deterministic shapes.  N is NOT a multiple of the tile so the
    # padding / -1e30 masking path is exercised; the second run forces the
    # streaming path (multi-tile, 2-way split, SMEM stats, online softmax).
    N, F, D, G = 500, 32, 32, 3            # F == D required by the residual add

    key = jax.random.PRNGKey(0)
    kp, kx, kd = jax.random.split(key, 3)

    params = init_params(kp, F, D)
    node_features = jax.random.normal(kx, (N, F), jnp.float32).astype(jnp.bfloat16)
    diagram_vector = jax.random.normal(kd, (G, D), jnp.float32)
    batch = (jnp.arange(N, dtype=jnp.int32) * G) // N          # graph id per node

    ref = reference_forward(node_features.astype(jnp.float32),
                            diagram_vector, batch, params)

    # 1) fused VMEM-resident fast path (default for small graphs).
    fwd_fast = jax.jit(attention_layer_forward)
    out_fast = jax.block_until_ready(
        fwd_fast(node_features, diagram_vector, batch, params))
    # 2) two-pass streaming path (what large graphs use), tiny tile on purpose.
    fwd_tiled = jax.jit(functools.partial(attention_layer_forward,
                                          tile_n=128, fast_path_rows=0))
    out_tiled = jax.block_until_ready(
        fwd_tiled(node_features, diagram_vector, batch, params))

    for out in (out_fast, out_tiled):
        assert out.shape == (N, F)
        o = out.astype(jnp.float32)
        assert bool(jnp.all(jnp.isfinite(o)))
        assert jnp.allclose(o, ref, atol=3e-2, rtol=3e-2), \
            "mismatch vs pure-JAX reference"
    print("KERNEL_OK")
</pallas_src>

<mosaic_0001>
module attributes {stable_mosaic.version = 11 : i64} {
  func.func @_fused_kernel(%arg0: i32, %arg1: memref<512x32xbf16, #tpu.memory_space<vmem>>, %arg2: memref<1x512xf32, #tpu.memory_space<vmem>>, %arg3: memref<8x32xbf16, #tpu.memory_space<vmem>>, %arg4: memref<32x32xbf16, #tpu.memory_space<vmem>>, %arg5: memref<1x32xf32, #tpu.memory_space<vmem>>, %arg6: memref<512x32xbf16, #tpu.memory_space<vmem>>) attributes {dimension_semantics = [#tpu.dimension_semantics<arbitrary>], iteration_bounds = array<i64: 1>, scalar_prefetch = 0 : i64, scratch_operands = 0 : i64, tpu.core_type = #tpu.core_type<tc>, window_params = [{pipeline_mode = #tpu.pipeline_mode<synchronous>, transform_indices = @transform_0, window_bounds = array<i64: 512, 32>}, {pipeline_mode = #tpu.pipeline_mode<synchronous>, transform_indices = @transform_1, window_bounds = array<i64: 1, 512>}, {pipeline_mode = #tpu.pipeline_mode<synchronous>, transform_indices = @transform_2, window_bounds = array<i64: 8, 32>}, {pipeline_mode = #tpu.pipeline_mode<synchronous>, transform_indices = @transform_3, window_bounds = array<i64: 32, 32>}, {pipeline_mode = #tpu.pipeline_mode<synchronous>, transform_indices = @transform_4, window_bounds = array<i64: 1, 32>}, {pipeline_mode = #tpu.pipeline_mode<synchronous>, transform_indices = @transform_5, window_bounds = array<i64: 512, 32>}]} {
    %c0 = arith.constant 0 : index
    %c0_0 = arith.constant 0 : index
    %0 = vector.load %arg1[%c0, %c0_0] : memref<512x32xbf16, #tpu.memory_space<vmem>>, vector<512x32xbf16>
    %c0_1 = arith.constant 0 : index
    %c0_2 = arith.constant 0 : index
    %1 = vector.load %arg3[%c0_1, %c0_2] : memref<8x32xbf16, #tpu.memory_space<vmem>>, vector<8x32xbf16>
    %cst = arith.constant dense<0.000000e+00> : vector<8x512xf32>
    %2 = tpu.matmul %1, %0, %cst {dimension_numbers = #tpu.dot_dimension_numbers<[1], [1], [0], [0], [0, 0, 1, 0], [], []>} : vector<8x32xbf16>, vector<512x32xbf16>, vector<8x512xf32> -> vector<8x512xf32>
    %c0_3 = arith.constant 0 : index
    %c0_4 = arith.constant 0 : index
    %3 = vector.load %arg2[%c0_3, %c0_4] : memref<1x512xf32, #tpu.memory_space<vmem>>, vector<1x512xf32>
    %4 = vector.broadcast %3 : vector<1x512xf32> to vector<8x512xf32>
    %5 = arith.addf %2, %4 : vector<8x512xf32>
    %cst_5 = arith.constant dense<0xFF800000> : vector<8xf32>
    %6 = vector.multi_reduction <maximumf>, %5, %cst_5 [1] : vector<8x512xf32> to vector<8xf32>
    %7 = vector.shape_cast %6 : vector<8xf32> to vector<8x1xf32>
    %cst_6 = arith.constant dense<0xFF800000> : vector<1xf32>
    %8 = vector.multi_reduction <maximumf>, %7, %cst_6 [0] : vector<8x1xf32> to vector<1xf32>
    %9 = vector.shape_cast %8 : vector<1xf32> to vector<1x1xf32>
    %10 = vector.broadcast %9 : vector<1x1xf32> to vector<8x512xf32>
    %11 = arith.subf %5, %10 : vector<8x512xf32>
    %12 = math.exp %11 : vector<8x512xf32>
    %cst_7 = arith.constant dense<0.000000e+00> : vector<8xf32>
    %13 = vector.multi_reduction <add>, %12, %cst_7 [1] : vector<8x512xf32> to vector<8xf32>
    %14 = vector.shape_cast %13 : vector<8xf32> to vector<8x1xf32>
    %cst_8 = arith.constant dense<0.000000e+00> : vector<1xf32>
    %15 = vector.multi_reduction <add>, %14, %cst_8 [0] : vector<8x1xf32> to vector<1xf32>
    %16 = vector.shape_cast %15 : vector<1xf32> to vector<1x1xf32>
    %cst_9 = arith.constant 1.250000e-01 : f32
    %17 = vector.broadcast %cst_9 : f32 to vector<1x1xf32>
    %18 = arith.mulf %16, %17 : vector<1x1xf32>
    %cst_10 = arith.constant 1.000000e+00 : f32
    %19 = vector.broadcast %cst_10 : f32 to vector<1x1xf32>
    %20 = arith.divf %19, %18 : vector<1x1xf32>
    %21 = vector.broadcast %20 : vector<1x1xf32> to vector<8x512xf32>
    %22 = arith.mulf %12, %21 : vector<8x512xf32>
    %cst_11 = arith.constant 1.250000e-01 : f32
    %23 = vector.broadcast %cst_11 : f32 to vector<8x32xf32>
    %cst_12 = arith.constant dense<0.000000e+00> : vector<512x32xf32>
    %24 = tpu.matmul %22, %23, %cst_12 {dimension_numbers = #tpu.dot_dimension_numbers<[0], [0], [1], [1], [0, 1, 1, 1], [], []>} : vector<8x512xf32>, vector<8x32xf32>, vector<512x32xf32> -> vector<512x32xf32>
    %c0_13 = arith.constant 0 : index
    %c0_14 = arith.constant 0 : index
    %25 = vector.load %arg4[%c0_13, %c0_14] : memref<32x32xbf16, #tpu.memory_space<vmem>>, vector<32x32xbf16>
    %cst_15 = arith.constant dense<0.000000e+00> : vector<512x32xf32>
    %26 = tpu.matmul %0, %25, %cst_15 {dimension_numbers = #tpu.dot_dimension_numbers<[1], [0], [0], [1], [0, 0, 1, 1], [], []>} : vector<512x32xbf16>, vector<32x32xbf16>, vector<512x32xf32> -> vector<512x32xf32>
    %c0_16 = arith.constant 0 : index
    %c0_17 = arith.constant 0 : index
    %27 = vector.load %arg5[%c0_16, %c0_17] : memref<1x32xf32, #tpu.memory_space<vmem>>, vector<1x32xf32>
    %28 = vector.broadcast %27 : vector<1x32xf32> to vector<512x32xf32>
    %29 = arith.addf %26, %28 : vector<512x32xf32>
    %30 = arith.mulf %24, %29 : vector<512x32xf32>
    %31 = arith.extf %0 : vector<512x32xbf16> to vector<512x32xf32>
    %32 = arith.addf %30, %31 : vector<512x32xf32>
    %33 = arith.truncf %32 : vector<512x32xf32> to vector<512x32xbf16>
    %c0_18 = arith.constant 0 : index
    %c0_19 = arith.constant 0 : index
    %34 = vector.load %arg6[%c0_18, %c0_19] : memref<512x32xbf16, #tpu.memory_space<vmem>>, vector<512x32xbf16>
    tpu.vector_store %arg6[%c0_18, %c0_19], %33 {strides = array<i32>} : memref<512x32xbf16, #tpu.memory_space<vmem>>, vector<512x32xbf16>,
    return
  }
  func.func @transform_0(%arg0: i32) -> (i32, i32) {
    %c0_i32 = arith.constant 0 : i32
    %c0_i32_0 = arith.constant 0 : i32
    %c0_i32_1 = arith.constant 0 : i32
    return %c0_i32, %c0_i32_0 : i32, i32
  }
  func.func @transform_1(%arg0: i32) -> (i32, i32) {
    %c0_i32 = arith.constant 0 : i32
    %c0_i32_0 = arith.constant 0 : i32
    %c0_i32_1 = arith.constant 0 : i32
    return %c0_i32, %c0_i32_0 : i32, i32
  }
  func.func @transform_2(%arg0: i32) -> (i32, i32) {
    %c0_i32 = arith.constant 0 : i32
    %c0_i32_0 = arith.constant 0 : i32
    %c0_i32_1 = arith.constant 0 : i32
    return %c0_i32, %c0_i32_0 : i32, i32
  }
  func.func @transform_3(%arg0: i32) -> (i32, i32) {
    %c0_i32 = arith.constant 0 : i32
    %c0_i32_0 = arith.constant 0 : i32
    %c0_i32_1 = arith.constant 0 : i32
    return %c0_i32, %c0_i32_0 : i32, i32
  }
  func.func @transform_4(%arg0: i32) -> (i32, i32) {
    %c0_i32 = arith.constant 0 : i32
    %c0_i32_0 = arith.constant 0 : i32
    %c0_i32_1 = arith.constant 0 : i32
    return %c0_i32, %c0_i32_0 : i32, i32
  }
  func.func @transform_5(%arg0: i32) -> (i32, i32) {
    %c0_i32 = arith.constant 0 : i32
    %c0_i32_0 = arith.constant 0 : i32
    %c0_i32_1 = arith.constant 0 : i32
    return %c0_i32, %c0_i32_0 : i32, i32
  }
}

</mosaic_0001>

<llo_original>
// kernel: attention_layer_forward.1
$region0: #{attention_layer_forward.1}
  #allocation0 [shape = 'u32[]', space=smem, size = 0x4, offset = 0x4, fixed_abs, tag = 'smem constant byte address 0x4 - core index']
  #allocation1 [shape = 'u32[144,128]{1,0:T(1,128)}', space=vmem, size = 0x12000, scoped, tag = 'internal scratch']
  %s0 = inlined_call_operand.vmem [shape: bf16[512,32], index: 0, kind: input, shape index: {}]
  %s1 = inlined_call_operand.vmem [shape: f32[1,512], index: 1, kind: input, shape index: {}]
  %s2 = inlined_call_operand.vmem [shape: bf16[8,32], index: 2, kind: input, shape index: {}]
  %s3 = inlined_call_operand.vmem [shape: bf16[32,32], index: 3, kind: input, shape index: {}]
  %s4 = inlined_call_operand.vmem [shape: f32[1,32], index: 4, kind: input, shape index: {}]
  %s5 = inlined_call_operand.vmem [shape: bf16[512,32], index: 5, kind: output, shape index: {}]
  %s6 = sld [smem:[#allocation0]]
  $region30: #{attention_layer_forward.1} parent=0
    _
  %s8 = ssub.s32 1, %s6
  %s9 = scalar_select 0, %s8, %s6
  // Predicated region
  $region2: #{attention_layer_forward.1} parent=0 // pred_check
    _
  $region3: #{attention_layer_forward.1} parent=0 // pred_check_branch
    %11 = sbr.rel (0) target = $region5
  $region4: #{attention_layer_forward.1} parent=0 // pred_region
    _
  $region5: #{attention_layer_forward.1} parent=0 // pred_fallthru
    _
  // Predicated region
  $region6: #{attention_layer_forward.1} parent=0 // pred_check
    _
  $region7: #{attention_layer_forward.1} parent=0 // pred_check_branch
    %13 = sbr.rel (0) target = $region9
  $region8: #{attention_layer_forward.1} parent=0 // pred_region
    _
  $region9: #{attention_layer_forward.1} parent=0 // pred_fallthru
    _
  // Predicated region
  $region10: #{attention_layer_forward.1} parent=0 // pred_check
    _
  $region11: #{attention_layer_forward.1} parent=0 // pred_check_branch
    %15 = sbr.rel (0) target = $region13
  $region12: #{attention_layer_forward.1} parent=0 // pred_region
    _
  $region13: #{attention_layer_forward.1} parent=0 // pred_fallthru
    _
  // Predicated region
  $region14: #{attention_layer_forward.1} parent=0 // pred_check
    _
  $region15: #{attention_layer_forward.1} parent=0 // pred_check_branch
    %17 = sbr.rel (0) target = $region17
  $region16: #{attention_layer_forward.1} parent=0 // pred_region
    _
  $region17: #{attention_layer_forward.1} parent=0 // pred_fallthru
    _
  // Predicated region
  $region18: #{attention_layer_forward.1} parent=0 // pred_check
    _
  $region19: #{attention_layer_forward.1} parent=0 // pred_check_branch
    %19 = sbr.rel (0) target = $region21
  $region20: #{attention_layer_forward.1} parent=0 // pred_region
    _
  $region21: #{attention_layer_forward.1} parent=0 // pred_fallthru
    _
  %v21 = vld [vmem:[%s0] sm:$0xf]
  %v22 = vld [vmem:[%s0 + $0x4] sm:$0xf]
  %v23 = vld [vmem:[%s0 + $0x8] sm:$0xf]
  %v24 = vld [vmem:[%s0 + $0xc] sm:$0xf]
  %v25 = vld [vmem:[%s0 + $0x10] sm:$0xf]
  %v26 = vld [vmem:[%s0 + $0x14] sm:$0xf]
  %v27 = vld [vmem:[%s0 + $0x18] sm:$0xf]
  %v28 = vld [vmem:[%s0 + $0x1c] sm:$0xf]
  %v29 = vld [vmem:[%s0 + $0x20] sm:$0xf]
  %v30 = vld [vmem:[%s0 + $0x24] sm:$0xf]
  %v31 = vld [vmem:[%s0 + $0x28] sm:$0xf]
  %v32 = vld [vmem:[%s0 + $0x2c] sm:$0xf]
  %v33 = vld [vmem:[%s0 + $0x30] sm:$0xf]
  %v34 = vld [vmem:[%s0 + $0x34] sm:$0xf]
  %v35 = vld [vmem:[%s0 + $0x38] sm:$0xf]
  %v36 = vld [vmem:[%s0 + $0x3c] sm:$0xf]
  %v37 = vld [vmem:[%s0 + $0x40] sm:$0xf]
  %v38 = vld [vmem:[%s0 + $0x44] sm:$0xf]
  %v39 = vld [vmem:[%s0 + $0x48] sm:$0xf]
  %v40 = vld [vmem:[%s0 + $0x4c] sm:$0xf]
  %v41 = vld [vmem:[%s0 + $0x50] sm:$0xf]
  %v42 = vld [vmem:[%s0 + $0x54] sm:$0xf]
  %v43 = vld [vmem:[%s0 + $0x58] sm:$0xf]
  %v44 = vld [vmem:[%s0 + $0x5c] sm:$0xf]
  %v45 = vld [vmem:[%s0 + $0x60] sm:$0xf]
  %v46 = vld [vmem:[%s0 + $0x64] sm:$0xf]
  %v47 = vld [vmem:[%s0 + $0x68] sm:$0xf]
  %v48 = vld [vmem:[%s0 + $0x6c] sm:$0xf]
  %v49 = vld [vmem:[%s0 + $0x70] sm:$0xf]
  %v50 = vld [vmem:[%s0 + $0x74] sm:$0xf]
  %v51 = vld [vmem:[%s0 + $0x78] sm:$0xf]
  %v52 = vld [vmem:[%s0 + $0x7c] sm:$0xf]
  %v53 = vld [vmem:[%s0 + $0x80] sm:$0xf]
  %v54 = vld [vmem:[%s0 + $0x84] sm:$0xf]
  %v55 = vld [vmem:[%s0 + $0x88] sm:$0xf]
  %v56 = vld [vmem:[%s0 + $0x8c] sm:$0xf]
  %v57 = vld [vmem:[%s0 + $0x90] sm:$0xf]
  %v58 = vld [vmem:[%s0 + $0x94] sm:$0xf]
  %v59 = vld [vmem:[%s0 + $0x98] sm:$0xf]
  %v60 = vld [vmem:[%s0 + $0x9c] sm:$0xf]
  %v61 = vld [vmem:[%s0 + $0xa0] sm:$0xf]
  %v62 = vld [vmem:[%s0 + $0xa4] sm:$0xf]
  %v63 = vld [vmem:[%s0 + $0xa8] sm:$0xf]
  %v64 = vld [vmem:[%s0 + $0xac] sm:$0xf]
  %v65 = vld [vmem:[%s0 + $0xb0] sm:$0xf]
  %v66 = vld [vmem:[%s0 + $0xb4] sm:$0xf]
  %v67 = vld [vmem:[%s0 + $0xb8] sm:$0xf]
  %v68 = vld [vmem:[%s0 + $0xbc] sm:$0xf]
  %v69 = vld [vmem:[%s0 + $0xc0] sm:$0xf]
  %v70 = vld [vmem:[%s0 + $0xc4] sm:$0xf]
  %v71 = vld [vmem:[%s0 + $0xc8] sm:$0xf]
  %v72 = vld [vmem:[%s0 + $0xcc] sm:$0xf]
  %v73 = vld [vmem:[%s0 + $0xd0] sm:$0xf]
  %v74 = vld [vmem:[%s0 + $0xd4] sm:$0xf]
  %v75 = vld [vmem:[%s0 + $0xd8] sm:$0xf]
  %v76 = vld [vmem:[%s0 + $0xdc] sm:$0xf]
  %v77 = vld [vmem:[%s0 + $0xe0] sm:$0xf]
  %v78 = vld [vmem:[%s0 + $0xe4] sm:$0xf]
  %v79 = vld [vmem:[%s0 + $0xe8] sm:$0xf]
  %v80 = vld [vmem:[%s0 + $0xec] sm:$0xf]
  %v81 = vld [vmem:[%s0 + $0xf0] sm:$0xf]
  %v82 = vld [vmem:[%s0 + $0xf4] sm:$0xf]
  %v83 = vld [vmem:[%s0 + $0xf8] sm:$0xf]
  %v84 = vld [vmem:[%s0 + $0xfc] sm:$0xf]
  %v85 = vld [vmem:[%s2] sm:$0xf]
  %v86 = vld [vmem:[%s1] sm:$0xf]
  %v88 = vlaneseq
  %v89 = vshrl.u32 %v88, 7
  %v90 = vsub.s32 0, %v89
  %v91 = vrot.slane %v86, %v90
  %v92 = vlaneseq
  %v93 = vshrl.u32 %v92, 7
  %v94 = vsub.s32 1, %v93
  %v95 = vrot.slane %v86, %v94
  %v96 = vlaneseq
  %v97 = vshrl.u32 %v96, 7
  %v98 = vsub.s32 2, %v97
  %v99 = vrot.slane %v86, %v98
  %v100 = vlaneseq
  %v101 = vshrl.u32 %v100, 7
  %v102 = vsub.s32 3, %v101
  %v103 = vrot.slane %v86, %v102
  %v172 = vunpack.c.l.b16 %v21
  %v173 = vunpack.c.l.b16 %v22
  %v174 = vunpack.c.l.b16 %v23
  %v175 = vunpack.c.l.b16 %v24
  %v176 = vunpack.c.l.b16 %v25
  %v177 = vunpack.c.l.b16 %v26
  %v178 = vunpack.c.l.b16 %v27
  %v179 = vunpack.c.l.b16 %v28
  %v180 = vunpack.c.l.b16 %v29
  %v181 = vunpack.c.l.b16 %v30
  %v182 = vunpack.c.l.b16 %v31
  %v183 = vunpack.c.l.b16 %v32
  %v184 = vunpack.c.l.b16 %v33
  %v185 = vunpack.c.l.b16 %v34
  %v186 = vunpack.c.l.b16 %v35
  %v187 = vunpack.c.l.b16 %v36
  %v188 = vunpack.c.l.b16 %v37
  %v189 = vunpack.c.l.b16 %v38
  %v190 = vunpack.c.l.b16 %v39
  %v191 = vunpack.c.l.b16 %v40
  %v192 = vunpack.c.l.b16 %v41
  %v193 = vunpack.c.l.b16 %v42
  %v194 = vunpack.c.l.b16 %v43
  %v195 = vunpack.c.l.b16 %v44
  %v196 = vunpack.c.l.b16 %v45
  %v197 = vunpack.c.l.b16 %v46
  %v198 = vunpack.c.l.b16 %v47
  %v199 = vunpack.c.l.b16 %v48
  %v200 = vunpack.c.l.b16 %v49
  %v201 = vunpack.c.l.b16 %v50
  %v202 = vunpack.c.l.b16 %v51
  %v203 = vunpack.c.l.b16 %v52
  %v204 = vunpack.c.l.b16 %v53
  %v205 = vunpack.c.l.b16 %v54
  %v206 = vunpack.c.l.b16 %v55
  %v207 = vunpack.c.l.b16 %v56
  %v208 = vunpack.c.l.b16 %v57
  %v209 = vunpack.c.l.b16 %v58
  %v210 = vunpack.c.l.b16 %v59
  %v211 = vunpack.c.l.b16 %v60
  %v212 = vunpack.c.l.b16 %v61
  %v213 = vunpack.c.l.b16 %v62
  %v214 = vunpack.c.l.b16 %v63
  %v215 = vunpack.c.l.b16 %v64
  %v216 = vunpack.c.l.b16 %v65
  %v217 = vunpack.c.l.b16 %v66
  %v218 = vunpack.c.l.b16 %v67
  %v219 = vunpack.c.l.b16 %v68
  %v220 = vunpack.c.l.b16 %v69
  %v221 = vunpack.c.l.b16 %v70
  %v222 = vunpack.c.l.b16 %v71
  %v223 = vunpack.c.l.b16 %v72
  %v224 = vunpack.c.l.b16 %v73
  %v225 = vunpack.c.l.b16 %v74
  %v226 = vunpack.c.l.b16 %v75
  %v227 = vunpack.c.l.b16 %v76
  %v228 = vunpack.c.l.b16 %v77
  %v229 = vunpack.c.l.b16 %v78
  %v230 = vunpack.c.l.b16 %v79
  %v231 = vunpack.c.l.b16 %v80
  %v232 = vunpack.c.l.b16 %v81
  %v233 = vunpack.c.l.b16 %v82
  %v234 = vunpack.c.l.b16 %v83
  %v235 = vunpack.c.l.b16 %v84
  %v236 = vpack.c.b16 %v173, %v172
  %v237 = vpack.c.b16 %v175, %v174
  %v238 = vpack.c.b16 %v177, %v176
  %v239 = vpack.c.b16 %v179, %v178
  %v240 = vpack.c.b16 %v181, %v180
  %v241 = vpack.c.b16 %v183, %v182
  %v242 = vpack.c.b16 %v185, %v184
  %v243 = vpack.c.b16 %v187, %v186
  %v244 = vpack.c.b16 %v189, %v188
  %v245 = vpack.c.b16 %v191, %v190
  %v246 = vpack.c.b16 %v193, %v192
  %v247 = vpack.c.b16 %v195, %v194
  %v248 = vpack.c.b16 %v197, %v196
  %v249 = vpack.c.b16 %v199, %v198
  %v250 = vpack.c.b16 %v201, %v200
  %v251 = vpack.c.b16 %v203, %v202
  %v252 = vpack.c.b16 %v205, %v204
  %v253 = vpack.c.b16 %v207, %v206
  %v254 = vpack.c.b16 %v209, %v208
  %v255 = vpack.c.b16 %v211, %v210
  %v256 = vpack.c.b16 %v213, %v212
  %v257 = vpack.c.b16 %v215, %v214
  %v258 = vpack.c.b16 %v217, %v216
  %v259 = vpack.c.b16 %v219, %v218
  %v260 = vpack.c.b16 %v221, %v220
  %v261 = vpack.c.b16 %v223, %v222
  %v262 = vpack.c.b16 %v225, %v224
  %v263 = vpack.c.b16 %v227, %v226
  %v264 = vpack.c.b16 %v229, %v228
  %v265 = vpack.c.b16 %v231, %v230
  %v266 = vpack.c.b16 %v233, %v232
  %v267 = vpack.c.b16 %v235, %v234
  %vm268 = vcmask 261120
  %v270 = vsel %vm268, %v85, 0
  %v273 = vsel %vm268, %v236, 0
  %v276 = vsel %vm268, %v237, 0
  %v279 = vsel %vm268, %v238, 0
  %v282 = vsel %vm268, %v239, 0
  %v285 = vsel %vm268, %v240, 0
  %v288 = vsel %vm268, %v241, 0
  %v291 = vsel %vm268, %v242, 0
  %v294 = vsel %vm268, %v243, 0
  %v297 = vsel %vm268, %v244, 0
  %v300 = vsel %vm268, %v245, 0
  %v303 = vsel %vm268, %v246, 0
  %v306 = vsel %vm268, %v247, 0
  %v309 = vsel %vm268, %v248, 0
  %v312 = vsel %vm268, %v249, 0
  %v315 = vsel %vm268, %v250, 0
  %v318 = vsel %vm268, %v251, 0
  %v321 = vsel %vm268, %v252, 0
  %v324 = vsel %vm268, %v253, 0
  %v327 = vsel %vm268, %v254, 0
  %v330 = vsel %vm268, %v255, 0
  %v333 = vsel %vm268, %v256, 0
  %v336 = vsel %vm268, %v257, 0
  %v339 = vsel %vm268, %v258, 0
  %v342 = vsel %vm268, %v259, 0
  %v345 = vsel %vm268, %v260, 0
  %v348 = vsel %vm268, %v261, 0
  %v351 = vsel %vm268, %v262, 0
  %v354 = vsel %vm268, %v263, 0
  %v357 = vsel %vm268, %v264, 0
  %v360 = vsel %vm268, %v265, 0
  %v363 = vsel %vm268, %v266, 0
  %v366 = vsel %vm268, %v267, 0
  %368 = vmatprep.subr.bf16.mxu0 0
  %369 = vmatpush1.bf16.xpose.msra.mxu0 %v273
  %370 = vmatprep.subr.bf16.mxu0 0
  %371 = vmatpush1.bf16.xpose.msra.mxu0 %v276
  %372 = vmatprep.subr.bf16.mxu0 0
  %373 = vmatpush1.bf16.xpose.msra.mxu0 %v279
  %374 = vmatprep.subr.bf16.mxu0 0
  %375 = vmatpush1.bf16.xpose.msra.mxu0 %v282
  %376 = vmatprep.subr.bf16.mxu0 0
  %377 = vmatpush1.bf16.xpose.msra.mxu0 %v285
  %378 = vmatprep.subr.bf16.mxu0 0
  %379 = vmatpush1.bf16.xpose.msra.mxu0 %v288
  %380 = vmatprep.subr.bf16.mxu0 0
  %381 = vmatpush1.bf16.xpose.msra.mxu0 %v291
  %382 = vmatprep.subr.bf16.mxu0 0
  %383 = vmatpush1.bf16.xpose.msra.mxu0 %v294
  %384 = vmatprep.subr.bf16.mxu0 0
  %385 = vmatpush1.bf16.xpose.msra.mxu0 %v297
  %386 = vmatprep.subr.bf16.mxu0 0
  %387 = vmatpush1.bf16.xpose.msra.mxu0 %v300
  %388 = vmatprep.subr.bf16.mxu0 0
  %389 = vmatpush1.bf16.xpose.msra.mxu0 %v303
  %390 = vmatprep.subr.bf16.mxu0 0
  %391 = vmatpush1.bf16.xpose.msra.mxu0 %v306
  %392 = vmatprep.subr.bf16.mxu0 0
  %393 = vmatpush1.bf16.xpose.msra.mxu0 %v309
  %394 = vmatprep.subr.bf16.mxu0 0
  %395 = vmatpush1.bf16.xpose.msra.mxu0 %v312
  %396 = vmatprep.subr.bf16.mxu0 0
  %397 = vmatpush1.bf16.xpose.msra.mxu0 %v315
  %398 = vmatprep.subr.bf16.mxu0 0
  %399 = vmatpush1.bf16.xpose.msra.mxu0 %v318
  %400 = vmatprep.mubr.bf16.mxu0 0
  %401 = vmatmul.mubr.bf16.gmra.mrb[0].mxu0 %v270
  %v402 = vpop.f32.mrb[0].mxu0
  %v403 = vadd.f32 %v91, %v402
  %v404 = vpop.f32.mrb[0].mxu0
  %v405 = vadd.f32 %v95, %v404
  %v406 = vpop.f32.mrb[0].mxu0
  %v407 = vpop.f32.mrb[0].mxu0
  %408 = vdwg.mxu0
  %409 = vmatprep.subr.bf16.mxu0 0
  %410 = vmatpush1.bf16.xpose.msra.mxu0 %v321
  %411 = vmatprep.subr.bf16.mxu0 0
  %412 = vmatpush1.bf16.xpose.msra.mxu0 %v324
  %413 = vmatprep.subr.bf16.mxu0 0
  %414 = vmatpush1.bf16.xpose.msra.mxu0 %v327
  %415 = vmatprep.subr.bf16.mxu0 0
  %416 = vmatpush1.bf16.xpose.msra.mxu0 %v330
  %417 = vmatprep.subr.bf16.mxu0 0
  %418 = vmatpush1.bf16.xpose.msra.mxu0 %v333
  %419 = vmatprep.subr.bf16.mxu0 0
  %420 = vmatpush1.bf16.xpose.msra.mxu0 %v336
  %421 = vmatprep.subr.bf16.mxu0 0
  %422 = vmatpush1.bf16.xpose.msra.mxu0 %v339
  %423 = vmatprep.subr.bf16.mxu0 0
  %424 = vmatpush1.bf16.xpose.msra.mxu0 %v342
  %425 = vmatprep.subr.bf16.mxu0 0
  %426 = vmatpush1.bf16.xpose.msra.mxu0 %v345
  %427 = vmatprep.subr.bf16.mxu0 0
  %428 = vmatpush1.bf16.xpose.msra.mxu0 %v348
  %429 = vmatprep.subr.bf16.mxu0 0
  %430 = vmatpush1.bf16.xpose.msra.mxu0 %v351
  %431 = vmatprep.subr.bf16.mxu0 0
  %432 = vmatpush1.bf16.xpose.msra.mxu0 %v354
  %433 = vmatprep.subr.bf16.mxu0 0
  %434 = vmatpush1.bf16.xpose.msra.mxu0 %v357
  %435 = vmatprep.subr.bf16.mxu0 0
  %436 = vmatpush1.bf16.xpose.msra.mxu0 %v360
  %437 = vmatprep.subr.bf16.mxu0 0
  %438 = vmatpush1.bf16.xpose.msra.mxu0 %v363
  %439 = vmatprep.subr.bf16.mxu0 0
  %440 = vmatpush1.bf16.xpose.msra.mxu0 %v366
  %441 = vmatprep.mubr.bf16.mxu0 0
  %442 = vmatmul.mubr.bf16.gmra.mrb[0].mxu0 %v270
  %v443 = vpop.f32.mrb[0].mxu0
  %v444 = vadd.f32 %v99, %v443
  %v445 = vpop.f32.mrb[0].mxu0
  %v446 = vadd.f32 %v103, %v445
  %v447 = vpop.f32.mrb[0].mxu0
  %v448 = vpop.f32.mrb[0].mxu0
  %449 = vdwg.mxu0
  %v450 = vmax.f32 %v403, %v405
  %v451 = vmax.f32 %v444, %v446
  %v452 = vmax.f32 %v450, %v451
  %453 = vmax.xlane.f32.xlu0 %v452
  %v454 = vpop.xlane.xlu0 %453
  %v455 = vrot.slane %v454, 4
  %v456 = vmax.f32 %v454, %v455
  %v457 = vrot.slane %v456, 2
  %v458 = vmax.f32 %v456, %v457
  %v459 = vrot.slane %v458, 1
  %v460 = vmax.f32 %v458, %v459
  %v461 = vsub.f32 %v403, %v460
  %v462 = vsub.f32 %v405, %v460
  %v463 = vsub.f32 %v444, %v460
  %v464 = vsub.f32 %v446, %v460
  %v465 = vmul.f32 %v461, 1.442695
  %v466 = vpow.pop %v465
  %v467 = vmul.f32 %v462, 1.442695
  %v468 = vpow.pop %v467
  %v469 = vmul.f32 %v463, 1.442695
  %v470 = vpow.pop %v469
  %v471 = vmul.f32 %v464, 1.442695
  %v472 = vpow.pop %v471
  %v473 = vadd.f32 %v466, %v468
  %v474 = vadd.f32 %v473, %v470
  %v475 = vadd.f32 %v474, %v472
  %476 = vadd.xlane.f32.xlu0 %v475
  %v477 = vpop.xlane.xlu0 %476
  %v478 = vrot.slane %v477, 4
  %v479 = vadd.f32 %v477, %v478
  %v480 = vrot.slane %v479, 2
  %v481 = vadd.f32 %v479, %v480
  %v482 = vrot.slane %v481, 1
  %v483 = vadd.f32 %v481, %v482
  %v484 = vmul.f32 %v483, 0.125
  %v485 = vrcp.pop %v484
  %v486 = vmul.f32 1.0, %v485
  %v487 = vmul.f32 %v466, %v486
  %v488 = vmul.f32 %v468, %v486
  %v489 = vmul.f32 %v470, %v486
  %v490 = vmul.f32 %v472, %v486
  %491 = vxpose.xlu0.b32.start [1/16] %v487, 128
  %492 = vxpose.xlu0.b32.cont [2/16] 0.0, 128
  %493 = vxpose.xlu0.b32.cont [3/16] 0.0, 128
  %494 = vxpose.xlu0.b32.cont [4/16] 0.0, 128
  %495 = vxpose.xlu0.b32.cont [5/16] 0.0, 128
  %496 = vxpose.xlu0.b32.cont [6/16] 0.0, 128
  %497 = vxpose.xlu0.b32.cont [7/16] 0.0, 128
  %498 = vxpose.xlu0.b32.cont [8/16] 0.0, 128
  %499 = vxpose.xlu0.b32.cont [9/16] 0.0, 128
  %500 = vxpose.xlu0.b32.cont [10/16] 0.0, 128
  %501 = vxpose.xlu0.b32.cont [11/16] 0.0, 128
  %502 = vxpose.xlu0.b32.cont [12/16] 0.0, 128
  %503 = vxpose.xlu0.b32.cont [13/16] 0.0, 128
  %504 = vxpose.xlu0.b32.cont [14/16] 0.0, 128
  %505 = vxpose.xlu0.b32.cont [15/16] 0.0, 128
  %506 = vxpose.xlu0.b32.end [16/16] 0.0, 128
  %v507 = vpop.trf.xlu0
  %v508 = vpop.trf.xlu0
  %v509 = vpop.trf.xlu0
  %v510 = vpop.trf.xlu0
  %v511 = vpop.trf.xlu0
  %v512 = vpop.trf.xlu0
  %v513 = vpop.trf.xlu0
  %v514 = vpop.trf.xlu0
  %v515 = vpop.trf.xlu0
  %v516 = vpop.trf.xlu0
  %v517 = vpop.trf.xlu0
  %v518 = vpop.trf.xlu0
  %v519 = vpop.trf.xlu0
  %v520 = vpop.trf.xlu0
  %v521 = vpop.trf.xlu0
  %v522 = vpop.trf.xlu0
  %523 = vxpose.xlu0.b32.start [1/16] %v488, 128
  %524 = vxpose.xlu0.b32.cont [2/16] 0.0, 128
  %525 = vxpose.xlu0.b32.cont [3/16] 0.0, 128
  %526 = vxpose.xlu0.b32.cont [4/16] 0.0, 128
  %527 = vxpose.xlu0.b32.cont [5/16] 0.0, 128
  %528 = vxpose.xlu0.b32.cont [6/16] 0.0, 128
  %529 = vxpose.xlu0.b32.cont [7/16] 0.0, 128
  %530 = vxpose.xlu0.b32.cont [8/16] 0.0, 128
  %531 = vxpose.xlu0.b32.cont [9/16] 0.0, 128
  %532 = vxpose.xlu0.b32.cont [10/16] 0.0, 128
  %533 = vxpose.xlu0.b32.cont [11/16] 0.0, 128
  %534 = vxpose.xlu0.b32.cont [12/16] 0.0, 128
  %535 = vxpose.xlu0.b32.cont [13/16] 0.0, 128
  %536 = vxpose.xlu0.b32.cont [14/16] 0.0, 128
  %537 = vxpose.xlu0.b32.cont [15/16] 0.0, 128
  %538 = vxpose.xlu0.b32.end [16/16] 0.0, 128
  %v539 = vpop.trf.xlu0
  %v540 = vpop.trf.xlu0
  %v541 = vpop.trf.xlu0
  %v542 = vpop.trf.xlu0
  %v543 = vpop.trf.xlu0
  %v544 = vpop.trf.xlu0
  %v545 = vpop.trf.xlu0
  %v546 = vpop.trf.xlu0
  %v547 = vpop.trf.xlu0
  %v548 = vpop.trf.xlu0
  %v549 = vpop.trf.xlu0
  %v550 = vpop.trf.xlu0
  %v551 = vpop.trf.xlu0
  %v552 = vpop.trf.xlu0
  %v553 = vpop.trf.xlu0
  %v554 = vpop.trf.xlu0
  %555 = vxpose.xlu0.b32.start [1/16] %v489, 128
  %556 = vxpose.xlu0.b32.cont [2/16] 0.0, 128
  %557 = vxpose.xlu0.b32.cont [3/16] 0.0, 128
  %558 = vxpose.xlu0.b32.cont [4/16] 0.0, 128
  %559 = vxpose.xlu0.b32.cont [5/16] 0.0, 128
  %560 = vxpose.xlu0.b32.cont [6/16] 0.0, 128
  %561 = vxpose.xlu0.b32.cont [7/16] 0.0, 128
  %562 = vxpose.xlu0.b32.cont [8/16] 0.0, 128
  %563 = vxpose.xlu0.b32.cont [9/16] 0.0, 128
  %564 = vxpose.xlu0.b32.cont [10/16] 0.0, 128
  %565 = vxpose.xlu0.b32.cont [11/16] 0.0, 128
  %566 = vxpose.xlu0.b32.cont [12/16] 0.0, 128
  %567 = vxpose.xlu0.b32.cont [13/16] 0.0, 128
  %568 = vxpose.xlu0.b32.cont [14/16] 0.0, 128
  %569 = vxpose.xlu0.b32.cont [15/16] 0.0, 128
  %570 = vxpose.xlu0.b32.end [16/16] 0.0, 128
  %v571 = vpop.trf.xlu0
  %v572 = vpop.trf.xlu0
  %v573 = vpop.trf.xlu0
  %v574 = vpop.trf.xlu0
  %v575 = vpop.trf.xlu0
  %v576 = vpop.trf.xlu0
  %v577 = vpop.trf.xlu0
  %v578 = vpop.trf.xlu0
  %v579 = vpop.trf.xlu0
  %v580 = vpop.trf.xlu0
  %v581 = vpop.trf.xlu0
  %v582 = vpop.trf.xlu0
  %v583 = vpop.trf.xlu0
  %v584 = vpop.trf.xlu0
  %v585 = vpop.trf.xlu0
  %v586 = vpop.trf.xlu0
  %587 = vxpose.xlu0.b32.start [1/16] %v490, 128
  %588 = vxpose.xlu0.b32.cont [2/16] 0.0, 128
  %589 = vxpose.xlu0.b32.cont [3/16] 0.0, 128
  %590 = vxpose.xlu0.b32.cont [4/16] 0.0, 128
  %591 = vxpose.xlu0.b32.cont [5/16] 0.0, 128
  %592 = vxpose.xlu0.b32.cont [6/16] 0.0, 128
  %593 = vxpose.xlu0.b32.cont [7/16] 0.0, 128
  %594 = vxpose.xlu0.b32.cont [8/16] 0.0, 128
  %595 = vxpose.xlu0.b32.cont [9/16] 0.0, 128
  %596 = vxpose.xlu0.b32.cont [10/16] 0.0, 128
  %597 = vxpose.xlu0.b32.cont [11/16] 0.0, 128
  %598 = vxpose.xlu0.b32.cont [12/16] 0.0, 128
  %599 = vxpose.xlu0.b32.cont [13/16] 0.0, 128
  %600 = vxpose.xlu0.b32.cont [14/16] 0.0, 128
  %601 = vxpose.xlu0.b32.cont [15/16] 0.0, 128
  %602 = vxpose.xlu0.b32.end [16/16] 0.0, 128
  %v603 = vpop.trf.xlu0
  %v604 = vpop.trf.xlu0
  %v605 = vpop.trf.xlu0
  %v606 = vpop.trf.xlu0
  %v607 = vpop.trf.xlu0
  %v608 = vpop.trf.xlu0
  %v609 = vpop.trf.xlu0
  %v610 = vpop.trf.xlu0
  %v611 = vpop.trf.xlu0
  %v612 = vpop.trf.xlu0
  %v613 = vpop.trf.xlu0
  %v614 = vpop.trf.xlu0
  %v615 = vpop.trf.xlu0
  %v616 = vpop.trf.xlu0
  %v617 = vpop.trf.xlu0
  %v618 = vpop.trf.xlu0
  %vm619 = vcmask 64512
  %v621 = vsel %vm619, %v507, 0
  %v624 = vsel %vm619, %v508, 0
  %v627 = vsel %vm619, %v509, 0
  %v630 = vsel %vm619, %v510, 0
  %v633 = vsel %vm619, %v511, 0
  %v636 = vsel %vm619, %v512, 0
  %v639 = vsel %vm619, %v513, 0
  %v642 = vsel %vm619, %v514, 0
  %v645 = vsel %vm619, %v515, 0
  %v648 = vsel %vm619, %v516, 0
  %v651 = vsel %vm619, %v517, 0
  %v654 = vsel %vm619, %v518, 0
  %v657 = vsel %vm619, %v519, 0
  %v660 = vsel %vm619, %v520, 0
  %v663 = vsel %vm619, %v521, 0
  %v666 = vsel %vm619, %v522, 0
  %v669 = vsel %vm619, %v539, 0
  %v672 = vsel %vm619, %v540, 0
  %v675 = vsel %vm619, %v541, 0
  %v678 = vsel %vm619, %v542, 0
  %v681 = vsel %vm619, %v543, 0
  %v684 = vsel %vm619, %v544, 0
  %v687 = vsel %vm619, %v545, 0
  %v690 = vsel %vm619, %v546, 0
  %v693 = vsel %vm619, %v547, 0
  %v696 = vsel %vm619, %v548, 0
  %v699 = vsel %vm619, %v549, 0
  %v702 = vsel %vm619, %v550, 0
  %v705 = vsel %vm619, %v551, 0
  %v708 = vsel %vm619, %v552, 0
  %v711 = vsel %vm619, %v553, 0
  %v714 = vsel %vm619, %v554, 0
  %v717 = vsel %vm619, %v571, 0
  %v720 = vsel %vm619, %v572, 0
  %v723 = vsel %vm619, %v573, 0
  %v726 = vsel %vm619, %v574, 0
  %v729 = vsel %vm619, %v575, 0
  %v732 = vsel %vm619, %v576, 0
  %v735 = vsel %vm619, %v577, 0
  %v738 = vsel %vm619, %v578, 0
  %v741 = vsel %vm619, %v579, 0
  %v744 = vsel %vm619, %v580, 0
  %v747 = vsel %vm619, %v581, 0
  %v750 = vsel %vm619, %v582, 0
  %v753 = vsel %vm619, %v583, 0
  %v756 = vsel %vm619, %v584, 0
  %v759 = vsel %vm619, %v585, 0
  %v762 = vsel %vm619, %v586, 0
  %v765 = vsel %vm619, %v603, 0
  %v768 = vsel %vm619, %v604, 0
  %v771 = vsel %vm619, %v605, 0
  %v774 = vsel %vm619, %v606, 0
  %v777 = vsel %vm619, %v607, 0
  %v780 = vsel %vm619, %v608, 0
  %v783 = vsel %vm619, %v609, 0
  %v786 = vsel %vm619, %v610, 0
  %v789 = vsel %vm619, %v611, 0
  %v792 = vsel %vm619, %v612, 0
  %v795 = vsel %vm619, %v613, 0
  %v798 = vsel %vm619, %v614, 0
  %v801 = vsel %vm619, %v615, 0
  %v804 = vsel %vm619, %v616, 0
  %v807 = vsel %vm619, %v617, 0
  %v810 = vsel %vm619, %v618, 0
  %812 = vmatprep.subr.mxu0 0.0
  %813 = vmatpush1.msra.mxu0 0.125
  %814 = vmatprep.subr.mxu0 0.0
  %815 = vmatpush1.msra.mxu0 0.0
  %816 = vmatprep.subr.mxu0 0.0
  %817 = vmatpush1.msra.mxu0 0.0
  %818 = vmatprep.subr.mxu0 0.0
  %819 = vmatpush1.msra.mxu0 0.0
  %820 = vmatprep.subr.mxu0 0.0
  %821 = vmatpush1.msra.mxu0 0.0
  %822 = vmatprep.subr.mxu0 0.0
  %823 = vmatpush1.msra.mxu0 0.0
  %824 = vmatprep.subr.mxu0 0.0
  %825 = vmatpush1.msra.mxu0 0.0
  %826 = vmatprep.subr.mxu0 0.0
  %827 = vmatpush1.msra.mxu0 0.0
  %828 = vmatprep.subr.mxu0 0.0
  %829 = vmatpush1.msra.mxu0 0.0
  %830 = vmatprep.subr.mxu0 0.0
  %831 = vmatpush1.msra.mxu0 0.0
  %832 = vmatprep.subr.mxu0 0.0
  %833 = vmatpush1.msra.mxu0 0.0
  %834 = vmatprep.subr.mxu0 0.0
  %835 = vmatpush1.msra.mxu0 0.0
  %836 = vmatprep.subr.mxu0 0.0
  %837 = vmatpush1.msra.mxu0 0.0
  %838 = vmatprep.subr.mxu0 0.0
  %839 = vmatpush1.msra.mxu0 0.0
  %840 = vmatprep.subr.mxu0 0.0
  %841 = vmatpush1.msra.mxu0 0.0
  %842 = vmatprep.subr.mxu0 0.0
  %843 = vmatpush1.msra.mxu0 0.0
  %844 = vmatprep.subr.mxu0 0.0
  %845 = vmatpush1.msra.mxu0 0.0
  %846 = vmatprep.subr.mxu0 0.0
  %847 = vmatpush1.msra.mxu0 0.0
  %848 = vmatprep.subr.mxu0 0.0
  %849 = vmatpush1.msra.mxu0 0.0
  %850 = vmatprep.subr.mxu0 0.0
  %851 = vmatpush1.msra.mxu0 0.0
  %852 = vmatprep.subr.mxu0 0.0
  %853 = vmatpush1.msra.mxu0 0.0
  %854 = vmatprep.subr.mxu0 0.0
  %855 = vmatpush1.msra.mxu0 0.0
  %856 = vmatprep.subr.mxu0 0.0
  %857 = vmatpush1.msra.mxu0 0.0
  %858 = vmatprep.subr.mxu0 0.0
  %859 = vmatpush1.msra.mxu0 0.0
  %860 = vmatprep.subr.mxu0 0.0
  %861 = vmatpush1.msra.mxu0 0.0
  %862 = vmatprep.subr.mxu0 0.0
  %863 = vmatpush1.msra.mxu0 0.0
  %864 = vmatprep.subr.mxu0 0.0
  %865 = vmatpush1.msra.mxu0 0.0
  %866 = vmatprep.subr.mxu0 0.0
  %867 = vmatpush1.msra.mxu0 0.0
  %868 = vmatprep.subr.mxu0 0.0
  %869 = vmatpush1.msra.mxu0 0.0
  %870 = vmatprep.subr.mxu0 0.0
  %871 = vmatpush1.msra.mxu0 0.0
  %872 = vmatprep.subr.mxu0 0.0
  %873 = vmatpush1.msra.mxu0 0.0
  %874 = vmatprep.subr.mxu0 0.0
  %875 = vmatpush1.msra.mxu0 0.0
  %876 = vmatprep.mubr.f32.mxu0 0.0
  %877 = vmatmul.mubr.f32.gmra.mrb[0].mxu0 %v621
  %v878 = vpop.f32.mrb[0].mxu0
  %v879 = vadd.f32 0.0, %v878
  %v880 = vpop.f32.mrb[0].mxu0
  %881 = vmatprep.mubr.f32.mxu0 0.0
  %882 = vmatmul.mubr.f32.gmra.mrb[0].mxu0 %v624
  %v883 = vpop.f32.mrb[0].mxu0
  %v884 = vadd.f32 0.0, %v883
  %v885 = vpop.f32.mrb[0].mxu0
  %886 = vmatprep.mubr.f32.mxu0 0.0
  %887 = vmatmul.mubr.f32.gmra.mrb[0].mxu0 %v627
  %v888 = vpop.f32.mrb[0].mxu0
  %v889 = vadd.f32 0.0, %v888
  %v890 = vpop.f32.mrb[0].mxu0
  %891 = vmatprep.mubr.f32.mxu0 0.0
  %892 = vmatmul.mubr.f32.gmra.mrb[0].mxu0 %v630
  %v893 = vpop.f32.mrb[0].mxu0
  %v894 = vadd.f32 0.0, %v893
  %v895 = vpop.f32.mrb[0].mxu0
  %896 = vmatprep.mubr.f32.mxu0 0.0
  %897 = vmatmul.mubr.f32.gmra.mrb[0].mxu0 %v633
  %v898 = vpop.f32.mrb[0].mxu0
  %v899 = vadd.f32 0.0, %v898
  %v900 = vpop.f32.mrb[0].mxu0
  %901 = vmatprep.mubr.f32.mxu0 0.0
  %902 = vmatmul.mubr.f32.gmra.mrb[0].mxu0 %v636
  %v903 = vpop.f32.mrb[0].mxu0
  %v904 = vadd.f32 0.0, %v903
  %v905 = vpop.f32.mrb[0].mxu0
  %906 = vmatprep.mubr.f32.mxu0 0.0
  %907 = vmatmul.mubr.f32.gmra.mrb[0].mxu0 %v639
  %v908 = vpop.f32.mrb[0].mxu0
  %v909 = vadd.f32 0.0, %v908
  %v910 = vpop.f32.mrb[0].mxu0
  %911 = vmatprep.mubr.f32.mxu0 0.0
  %912 = vmatmul.mubr.f32.gmra.mrb[0].mxu0 %v642
  %v913 = vpop.f32.mrb[0].mxu0
  %v914 = vadd.f32 0.0, %v913
  %v915 = vpop.f32.mrb[0].mxu0
  %916 = vmatprep.mubr.f32.mxu0 0.0
  %917 = vmatmul.mubr.f32.gmra.mrb[0].mxu0 %v645
  %v918 = vpop.f32.mrb[0].mxu0
  %v919 = vadd.f32 0.0, %v918
  %v920 = vpop.f32.mrb[0].mxu0
  %921 = vmatprep.mubr.f32.mxu0 0.0
  %922 = vmatmul.mubr.f32.gmra.mrb[0].mxu0 %v648
  %v923 = vpop.f32.mrb[0].mxu0
  %v924 = vadd.f32 0.0, %v923
  %v925 = vpop.f32.mrb[0].mxu0
  %926 = vmatprep.mubr.f32.mxu0 0.0
  %927 = vmatmul.mubr.f32.gmra.mrb[0].mxu0 %v651
  %v928 = vpop.f32.mrb[0].mxu0
  %v929 = vadd.f32 0.0, %v928
  %v930 = vpop.f32.mrb[0].mxu0
  %931 = vmatprep.mubr.f32.mxu0 0.0
  %932 = vmatmul.mubr.f32.gmra.mrb[0].mxu0 %v654
  %v933 = vpop.f32.mrb[0].mxu0
  %v934 = vadd.f32 0.0, %v933
  %v935 = vpop.f32.mrb[0].mxu0
  %936 = vmatprep.mubr.f32.mxu0 0.0
  %937 = vmatmul.mubr.f32.gmra.mrb[0].mxu0 %v657
  %v938 = vpop.f32.mrb[0].mxu0
  %v939 = vadd.f32 0.0, %v938
  %v940 = vpop.f32.mrb[0].mxu0
  %941 = vmatprep.mubr.f32.mxu0 0.0
  %942 = vmatmul.mubr.f32.gmra.mrb[0].mxu0 %v660
  %v943 = vpop.f32.mrb[0].mxu0
  %v944 = vadd.f32 0.0, %v943
  %v945 = vpop.f32.mrb[0].mxu0
  %946 = vmatprep.mubr.f32.mxu0 0.0
  %947 = vmatmul.mubr.f32.gmra.mrb[0].mxu0 %v663
  %v948 = vpop.f32.mrb[0].mxu0
  %v949 = vadd.f32 0.0, %v948
  %v950 = vpop.f32.mrb[0].mxu0
  %951 = vmatprep.mubr.f32.mxu0 0.0
  %952 = vmatmul.mubr.f32.gmra.mrb[0].mxu0 %v666
  %v953 = vpop.f32.mrb[0].mxu0
  %v954 = vadd.f32 0.0, %v953
  %v955 = vpop.f32.mrb[0].mxu0
  %956 = vmatprep.mubr.f32.mxu0 0.0
  %957 = vmatmul.mubr.f32.gmra.mrb[0].mxu0 %v669
  %v958 = vpop.f32.mrb[0].mxu0
  %v959 = vadd.f32 0.0, %v958
  %v960 = vpop.f32.mrb[0].mxu0
  %961 = vmatprep.mubr.f32.mxu0 0.0
  %962 = vmatmul.mubr.f32.gmra.mrb[0].mxu0 %v672
  %v963 = vpop.f32.mrb[0].mxu0
  %v964 = vadd.f32 0.0, %v963
  %v965 = vpop.f32.mrb[0].mxu0
  %966 = vmatprep.mubr.f32.mxu0 0.0
  %967 = vmatmul.mubr.f32.gmra.mrb[0].mxu0 %v675
  %v968 = vpop.f32.mrb[0].mxu0
  %v969 = vadd.f32 0.0, %v968
  %v970 = vpop.f32.mrb[0].mxu0
  %971 = vmatprep.mubr.f32.mxu0 0.0
  %972 = vmatmul.mubr.f32.gmra.mrb[0].mxu0 %v678
  %v973 = vpop.f32.mrb[0].mxu0
  %v974 = vadd.f32 0.0, %v973
  %v975 = vpop.f32.mrb[0].mxu0
  %976 = vmatprep.mubr.f32.mxu0 0.0
  %977 = vmatmul.mubr.f32.gmra.mrb[0].mxu0 %v681
  %v978 = vpop.f32.mrb[0].mxu0
  %v979 = vadd.f32 0.0, %v978
  %v980 = vpop.f32.mrb[0].mxu0
  %981 = vmatprep.mubr.f32.mxu0 0.0
  %982 = vmatmul.mubr.f32.gmra.mrb[0].mxu0 %v684
  %v983 = vpop.f32.mrb[0].mxu0
  %v984 = vadd.f32 0.0, %v983
  %v985 = vpop.f32.mrb[0].mxu0
  %986 = vmatprep.mubr.f32.mxu0 0.0
  %987 = vmatmul.mubr.f32.gmra.mrb[0].mxu0 %v687
  %v988 = vpop.f32.mrb[0].mxu0
  %v989 = vadd.f32 0.0, %v988
  %v990 = vpop.f32.mrb[0].mxu0
  %991 = vmatprep.mubr.f32.mxu0 0.0
  %992 = vmatmul.mubr.f32.gmra.mrb[0].mxu0 %v690
  %v993 = vpop.f32.mrb[0].mxu0
  %v994 = vadd.f32 0.0, %v993
  %v995 = vpop.f32.mrb[0].mxu0
  %996 = vmatprep.mubr.f32.mxu0 0.0
  %997 = vmatmul.mubr.f32.gmra.mrb[0].mxu0 %v693
  %v998 = vpop.f32.mrb[0].mxu0
  %v999 = vadd.f32 0.0, %v998
  %v1000 = vpop.f32.mrb[0].mxu0
  %1001 = vmatprep.mubr.f32.mxu0 0.0
  %1002 = vmatmul.mubr.f32.gmra.mrb[0].mxu0 %v696
  %v1003 = vpop.f32.mrb[0].mxu0
  %v1004 = vadd.f32 0.0, %v1003
  %v1005 = vpop.f32.mrb[0].mxu0
  %1006 = vmatprep.mubr.f32.mxu0 0.0
  %1007 = vmatmul.mubr.f32.gmra.mrb[0].mxu0 %v699
  %v1008 = vpop.f32.mrb[0].mxu0
  %v1009 = vadd.f32 0.0, %v1008
  %v1010 = vpop.f32.mrb[0].mxu0
  %1011 = vmatprep.mubr.f32.mxu0 0.0
  %1012 = vmatmul.mubr.f32.gmra.mrb[0].mxu0 %v702
  %v1013 = vpop.f32.mrb[0].mxu0
  %v1014 = vadd.f32 0.0, %v1013
  %v1015 = vpop.f32.mrb[0].mxu0
  %1016 = vmatprep.mubr.f32.mxu0 0.0
  %1017 = vmatmul.mubr.f32.gmra.mrb[0].mxu0 %v705
  %v1018 = vpop.f32.mrb[0].mxu0
  %v1019 = vadd.f32 0.0, %v1018
  %v1020 = vpop.f32.mrb[0].mxu0
  %1021 = vmatprep.mubr.f32.mxu0 0.0
  %1022 = vmatmul.mubr.f32.gmra.mrb[0].mxu0 %v708
  %v1023 = vpop.f32.mrb[0].mxu0
  %v1024 = vadd.f32 0.0, %v1023
  %v1025 = vpop.f32.mrb[0].mxu0
  %1026 = vmatprep.mubr.f32.mxu0 0.0
  %1027 = vmatmul.mubr.f32.gmra.mrb[0].mxu0 %v711
  %v1028 = vpop.f32.mrb[0].mxu0
  %v1029 = vadd.f32 0.0, %v1028
  %v1030 = vpop.f32.mrb[0].mxu0
  %1031 = vmatprep.mubr.f32.mxu0 0.0
  %1032 = vmatmul.mubr.f32.gmra.mrb[0].mxu0 %v714
  %v1033 = vpop.f32.mrb[0].mxu0
  %v1034 = vadd.f32 0.0, %v1033
  %v1035 = vpop.f32.mrb[0].mxu0
  %1036 = vmatprep.mubr.f32.mxu0 0.0
  %1037 = vmatmul.mubr.f32.gmra.mrb[0].mxu0 %v717
  %v1038 = vpop.f32.mrb[0].mxu0
  %v1039 = vadd.f32 0.0, %v1038
  %v1040 = vpop.f32.mrb[0].mxu0
  %1041 = vmatprep.mubr.f32.mxu0 0.0
  %1042 = vmatmul.mubr.f32.gmra.mrb[0].mxu0 %v720
  %v1043 = vpop.f32.mrb[0].mxu0
  %v1044 = vadd.f32 0.0, %v1043
  %v1045 = vpop.f32.mrb[0].mxu0
  %1046 = vmatprep.mubr.f32.mxu0 0.0
  %1047 = vmatmul.mubr.f32.gmra.mrb[0].mxu0 %v723
  %v1048 = vpop.f32.mrb[0].mxu0
  %v1049 = vadd.f32 0.0, %v1048
  %v1050 = vpop.f32.mrb[0].mxu0
  %1051 = vmatprep.mubr.f32.mxu0 0.0
  %1052 = vmatmul.mubr.f32.gmra.mrb[0].mxu0 %v726
  %v1053 = vpop.f32.mrb[0].mxu0
  %v1054 = vadd.f32 0.0, %v1053
  %v1055 = vpop.f32.mrb[0].mxu0
  %1056 = vmatprep.mubr.f32.mxu0 0.0
  %1057 = vmatmul.mubr.f32.gmra.mrb[0].mxu0 %v729
  %v1058 = vpop.f32.mrb[0].mxu0
  %v1059 = vadd.f32 0.0, %v1058
  %v1060 = vpop.f32.mrb[0].mxu0
  %1061 = vmatprep.mubr.f32.mxu0 0.0
  %1062 = vmatmul.mubr.f32.gmra.mrb[0].mxu0 %v732
  %v1063 = vpop.f32.mrb[0].mxu0
  %v1064 = vadd.f32 0.0, %v1063
  %v1065 = vpop.f32.mrb[0].mxu0
  %1066 = vmatprep.mubr.f32.mxu0 0.0
  %1067 = vmatmul.mubr.f32.gmra.mrb[0].mxu0 %v735
  %v1068 = vpop.f32.mrb[0].mxu0
  %v1069 = vadd.f32 0.0, %v1068
  %v1070 = vpop.f32.mrb[0].mxu0
  %1071 = vmatprep.mubr.f32.mxu0 0.0
  %1072 = vmatmul.mubr.f32.gmra.mrb[0].mxu0 %v738
  %v1073 = vpop.f32.mrb[0].mxu0
  %v1074 = vadd.f32 0.0, %v1073
  %v1075 = vpop.f32.mrb[0].mxu0
  %1076 = vmatprep.mubr.f32.mxu0 0.0
  %1077 = vmatmul.mubr.f32.gmra.mrb[0].mxu0 %v741
  %v1078 = vpop.f32.mrb[0].mxu0
  %v1079 = vadd.f32 0.0, %v1078
  %v1080 = vpop.f32.mrb[0].mxu0
  %1081 = vmatprep.mubr.f32.mxu0 0.0
  %1082 = vmatmul.mubr.f32.gmra.mrb[0].mxu0 %v744
  %v1083 = vpop.f32.mrb[0].mxu0
  %v1084 = vadd.f32 0.0, %v1083
  %v1085 = vpop.f32.mrb[0].mxu0
  %1086 = vmatprep.mubr.f32.mxu0 0.0
  %1087 = vmatmul.mubr.f32.gmra.mrb[0].mxu0 %v747
  %v1088 = vpop.f32.mrb[0].mxu0
  %v1089 = vadd.f32 0.0, %v1088
  %v1090 = vpop.f32.mrb[0].mxu0
  %1091 = vmatprep.mubr.f32.mxu0 0.0
  %1092 = vmatmul.mubr.f32.gmra.mrb[0].mxu0 %v750
  %v1093 = vpop.f32.mrb[0].mxu0
  %v1094 = vadd.f32 0.0, %v1093
  %v1095 = vpop.f32.mrb[0].mxu0
  %1096 = vmatprep.mubr.f32.mxu0 0.0
  %1097 = vmatmul.mubr.f32.gmra.mrb[0].mxu0 %v753
  %v1098 = vpop.f32.mrb[0].mxu0
  %v1099 = vadd.f32 0.0, %v1098
  %v1100 = vpop.f32.mrb[0].mxu0
  %1101 = vmatprep.mubr.f32.mxu0 0.0
  %1102 = vmatmul.mubr.f32.gmra.mrb[0].mxu0 %v756
  %v1103 = vpop.f32.mrb[0].mxu0
  %v1104 = vadd.f32 0.0, %v1103
  %v1105 = vpop.f32.mrb[0].mxu0
  %1106 = vmatprep.mubr.f32.mxu0 0.0
  %1107 = vmatmul.mubr.f32.gmra.mrb[0].mxu0 %v759
  %v1108 = vpop.f32.mrb[0].mxu0
  %v1109 = vadd.f32 0.0, %v1108
  %v1110 = vpop.f32.mrb[0].mxu0
  %1111 = vmatprep.mubr.f32.mxu0 0.0
  %1112 = vmatmul.mubr.f32.gmra.mrb[0].mxu0 %v762
  %v1113 = vpop.f32.mrb[0].mxu0
  %v1114 = vadd.f32 0.0, %v1113
  %v1115 = vpop.f32.mrb[0].mxu0
  %1116 = vmatprep.mubr.f32.mxu0 0.0
  %1117 = vmatmul.mubr.f32.gmra.mrb[0].mxu0 %v765
  %v1118 = vpop.f32.mrb[0].mxu0
  %v1119 = vadd.f32 0.0, %v1118
  %v1120 = vpop.f32.mrb[0].mxu0
  %1121 = vmatprep.mubr.f32.mxu0 0.0
  %1122 = vmatmul.mubr.f32.gmra.mrb[0].mxu0 %v768
  %v1123 = vpop.f32.mrb[0].mxu0
  %v1124 = vadd.f32 0.0, %v1123
  %v1125 = vpop.f32.mrb[0].mxu0
  %1126 = vmatprep.mubr.f32.mxu0 0.0
  %1127 = vmatmul.mubr.f32.gmra.mrb[0].mxu0 %v771
  %v1128 = vpop.f32.mrb[0].mxu0
  %v1129 = vadd.f32 0.0, %v1128
  %v1130 = vpop.f32.mrb[0].mxu0
  %1131 = vmatprep.mubr.f32.mxu0 0.0
  %1132 = vmatmul.mubr.f32.gmra.mrb[0].mxu0 %v774
  %v1133 = vpop.f32.mrb[0].mxu0
  %v1134 = vadd.f32 0.0, %v1133
  %v1135 = vpop.f32.mrb[0].mxu0
  %1136 = vmatprep.mubr.f32.mxu0 0.0
  %1137 = vmatmul.mubr.f32.gmra.mrb[0].mxu0 %v777
  %v1138 = vpop.f32.mrb[0].mxu0
  %v1139 = vadd.f32 0.0, %v1138
  %v1140 = vpop.f32.mrb[0].mxu0
  %1141 = vmatprep.mubr.f32.mxu0 0.0
  %1142 = vmatmul.mubr.f32.gmra.mrb[0].mxu0 %v780
  %v1143 = vpop.f32.mrb[0].mxu0
  %v1144 = vadd.f32 0.0, %v1143
  %v1145 = vpop.f32.mrb[0].mxu0
  %1146 = vmatprep.mubr.f32.mxu0 0.0
  %1147 = vmatmul.mubr.f32.gmra.mrb[0].mxu0 %v783
  %v1148 = vpop.f32.mrb[0].mxu0
  %v1149 = vadd.f32 0.0, %v1148
  %v1150 = vpop.f32.mrb[0].mxu0
  %1151 = vmatprep.mubr.f32.mxu0 0.0
  %1152 = vmatmul.mubr.f32.gmra.mrb[0].mxu0 %v786
  %v1153 = vpop.f32.mrb[0].mxu0
  %v1154 = vadd.f32 0.0, %v1153
  %v1155 = vpop.f32.mrb[0].mxu0
  %1156 = vmatprep.mubr.f32.mxu0 0.0
  %1157 = vmatmul.mubr.f32.gmra.mrb[0].mxu0 %v789
  %v1158 = vpop.f32.mrb[0].mxu0
  %v1159 = vadd.f32 0.0, %v1158
  %v1160 = vpop.f32.mrb[0].mxu0
  %1161 = vmatprep.mubr.f32.mxu0 0.0
  %1162 = vmatmul.mubr.f32.gmra.mrb[0].mxu0 %v792
  %v1163 = vpop.f32.mrb[0].mxu0
  %v1164 = vadd.f32 0.0, %v1163
  %v1165 = vpop.f32.mrb[0].mxu0
  %1166 = vmatprep.mubr.f32.mxu0 0.0
  %1167 = vmatmul.mubr.f32.gmra.mrb[0].mxu0 %v795
  %v1168 = vpop.f32.mrb[0].mxu0
  %v1169 = vadd.f32 0.0, %v1168
  %v1170 = vpop.f32.mrb[0].mxu0
  %1171 = vmatprep.mubr.f32.mxu0 0.0
  %1172 = vmatmul.mubr.f32.gmra.mrb[0].mxu0 %v798
  %v1173 = vpop.f32.mrb[0].mxu0
  %v1174 = vadd.f32 0.0, %v1173
  %v1175 = vpop.f32.mrb[0].mxu0
  %1176 = vmatprep.mubr.f32.mxu0 0.0
  %1177 = vmatmul.mubr.f32.gmra.mrb[0].mxu0 %v801
  %v1178 = vpop.f32.mrb[0].mxu0
  %v1179 = vadd.f32 0.0, %v1178
  %v1180 = vpop.f32.mrb[0].mxu0
  %1181 = vmatprep.mubr.f32.mxu0 0.0
  %1182 = vmatmul.mubr.f32.gmra.mrb[0].mxu0 %v804
  %v1183 = vpop.f32.mrb[0].mxu0
  %v1184 = vadd.f32 0.0, %v1183
  %v1185 = vpop.f32.mrb[0].mxu0
  %1186 = vmatprep.mubr.f32.mxu0 0.0
  %1187 = vmatmul.mubr.f32.gmra.mrb[0].mxu0 %v807
  %v1188 = vpop.f32.mrb[0].mxu0
  %v1189 = vadd.f32 0.0, %v1188
  %v1190 = vpop.f32.mrb[0].mxu0
  %1191 = vmatprep.mubr.f32.mxu0 0.0
  %1192 = vmatmul.mubr.f32.gmra.mrb[0].mxu0 %v810
  %v1193 = vpop.f32.mrb[0].mxu0
  %v1194 = vadd.f32 0.0, %v1193
  %v1195 = vpop.f32.mrb[0].mxu0
  %1196 = vdwg.mxu0
  %v1197 = vld [vmem:[%s3] sm:$0xf]
  %v1198 = vld [vmem:[%s3 + $0x4] sm:$0xf]
  %v1199 = vld [vmem:[%s3 + $0x8] sm:$0xf]
  %v1200 = vld [vmem:[%s3 + $0xc] sm:$0xf]
  %v1201 = vld [vmem:[%s4] sm:$0x1]
  %v1203 = vlaneseq
  %v1204 = vshrl.u32 %v1203, 7
  %v1205 = vsub.s32 0, %v1204
  %v1206 = vrot.slane %v1201, %v1205
  %v1212 = vunpack.c.l.b16 %v1197
  %v1213 = vunpack.c.l.b16 %v1198
  %v1214 = vunpack.c.l.b16 %v1199
  %v1215 = vunpack.c.l.b16 %v1200
  %v1216 = vpack.c.b16 %v1213, %v1212
  %v1217 = vpack.c.b16 %v1215, %v1214
  %1220 = vmatprep.subr.bf16.mxu0 0
  %1221 = vmatpush1.bf16.msra.mxu0 %v1216
  %1222 = vmatprep.subr.bf16.mxu0 0
  %1223 = vmatpush1.bf16.msra.mxu0 %v1217
  %1224 = vmatprep.subr.bf16.mxu0 0
  %1225 = vmatpush1.bf16.msra.mxu0 0
  %1226 = vmatprep.subr.bf16.mxu0 0
  %1227 = vmatpush1.bf16.msra.mxu0 0
  %1228 = vmatprep.subr.bf16.mxu0 0
  %1229 = vmatpush1.bf16.msra.mxu0 0
  %1230 = vmatprep.subr.bf16.mxu0 0
  %1231 = vmatpush1.bf16.msra.mxu0 0
  %1232 = vmatprep.subr.bf16.mxu0 0
  %1233 = vmatpush1.bf16.msra.mxu0 0
  %1234 = vmatprep.subr.bf16.mxu0 0
  %1235 = vmatpush1.bf16.msra.mxu0 0
  %1236 = vmatprep.subr.bf16.mxu0 0
  %1237 = vmatpush1.bf16.msra.mxu0 0
  %1238 = vmatprep.subr.bf16.mxu0 0
  %1239 = vmatpush1.bf16.msra.mxu0 0
  %1240 = vmatprep.subr.bf16.mxu0 0
  %1241 = vmatpush1.bf16.msra.mxu0 0
  %1242 = vmatprep.subr.bf16.mxu0 0
  %1243 = vmatpush1.bf16.msra.mxu0 0
  %1244 = vmatprep.subr.bf16.mxu0 0
  %1245 = vmatpush1.bf16.msra.mxu0 0
  %1246 = vmatprep.subr.bf16.mxu0 0
  %1247 = vmatpush1.bf16.msra.mxu0 0
  %1248 = vmatprep.subr.bf16.mxu0 0
  %1249 = vmatpush1.bf16.msra.mxu0 0
  %1250 = vmatprep.subr.bf16.mxu0 0
  %1251 = vmatpush1.bf16.msra.mxu0 0
  %1252 = vmatprep.mubr.bf16.mxu0 0
  %1253 = vmatmul.mubr.bf16.gmra.mrb[0].mxu0 %v273
  %v1254 = vpop.f32.mrb[0].mxu0
  %v1255 = vadd.f32 %v1206, %v1254
  %v1256 = vpop.f32.mrb[0].mxu0
  %v1257 = vpop.f32.mrb[0].mxu0
  %v1258 = vadd.f32 %v1206, %v1257
  %v1259 = vpop.f32.mrb[0].mxu0
  %1260 = vmatprep.mubr.bf16.mxu0 0
  %1261 = vmatmul.mubr.bf16.gmra.mrb[0].mxu0 %v276
  %v1262 = vpop.f32.mrb[0].mxu0
  %v1263 = vadd.f32 %v1206, %v1262
  %v1264 = vpop.f32.mrb[0].mxu0
  %v1265 = vpop.f32.mrb[0].mxu0
  %v1266 = vadd.f32 %v1206, %v1265
  %v1267 = vpop.f32.mrb[0].mxu0
  %1268 = vmatprep.mubr.bf16.mxu0 0
  %1269 = vmatmul.mubr.bf16.gmra.mrb[0].mxu0 %v279
  %v1270 = vpop.f32.mrb[0].mxu0
  %v1271 = vadd.f32 %v1206, %v1270
  %v1272 = vpop.f32.mrb[0].mxu0
  %v1273 = vpop.f32.mrb[0].mxu0
  %v1274 = vadd.f32 %v1206, %v1273
  %v1275 = vpop.f32.mrb[0].mxu0
  %1276 = vmatprep.mubr.bf16.mxu0 0
  %1277 = vmatmul.mubr.bf16.gmra.mrb[0].mxu0 %v282
  %v1278 = vpop.f32.mrb[0].mxu0
  %v1279 = vadd.f32 %v1206, %v1278
  %v1280 = vpop.f32.mrb[0].mxu0
  %v1281 = vpop.f32.mrb[0].mxu0
  %v1282 = vadd.f32 %v1206, %v1281
  %v1283 = vpop.f32.mrb[0].mxu0
  %1284 = vmatprep.mubr.bf16.mxu0 0
  %1285 = vmatmul.mubr.bf16.gmra.mrb[0].mxu0 %v285
  %v1286 = vpop.f32.mrb[0].mxu0
  %v1287 = vadd.f32 %v1206, %v1286
  %v1288 = vpop.f32.mrb[0].mxu0
  %v1289 = vpop.f32.mrb[0].mxu0
  %v1290 = vadd.f32 %v1206, %v1289
  %v1291 = vpop.f32.mrb[0].mxu0
  %1292 = vmatprep.mubr.bf16.mxu0 0
  %1293 = vmatmul.mubr.bf16.gmra.mrb[0].mxu0 %v288
  %v1294 = vpop.f32.mrb[0].mxu0
  %v1295 = vadd.f32 %v1206, %v1294
  %v1296 = vpop.f32.mrb[0].mxu0
  %v1297 = vpop.f32.mrb[0].mxu0
  %v1298 = vadd.f32 %v1206, %v1297
  %v1299 = vpop.f32.mrb[0].mxu0
  %1300 = vmatprep.mubr.bf16.mxu0 0
  %1301 = vmatmul.mubr.bf16.gmra.mrb[0].mxu0 %v291
  %v1302 = vpop.f32.mrb[0].mxu0
  %v1303 = vadd.f32 %v1206, %v1302
  %v1304 = vpop.f32.mrb[0].mxu0
  %v1305 = vpop.f32.mrb[0].mxu0
  %v1306 = vadd.f32 %v1206, %v1305
  %v1307 = vpop.f32.mrb[0].mxu0
  %1308 = vmatprep.mubr.bf16.mxu0 0
  %1309 = vmatmul.mubr.bf16.gmra.mrb[0].mxu0 %v294
  %v1310 = vpop.f32.mrb[0].mxu0
  %v1311 = vadd.f32 %v1206, %v1310
  %v1312 = vpop.f32.mrb[0].mxu0
  %v1313 = vpop.f32.mrb[0].mxu0
  %v1314 = vadd.f32 %v1206, %v1313
  %v1315 = vpop.f32.mrb[0].mxu0
  %1316 = vmatprep.mubr.bf16.mxu0 0
  %1317 = vmatmul.mubr.bf16.gmra.mrb[0].mxu0 %v297
  %v1318 = vpop.f32.mrb[0].mxu0
  %v1319 = vadd.f32 %v1206, %v1318
  %v1320 = vpop.f32.mrb[0].mxu0
  %v1321 = vpop.f32.mrb[0].mxu0
  %v1322 = vadd.f32 %v1206, %v1321
  %v1323 = vpop.f32.mrb[0].mxu0
  %1324 = vmatprep.mubr.bf16.mxu0 0
  %1325 = vmatmul.mubr.bf16.gmra.mrb[0].mxu0 %v300
  %v1326 = vpop.f32.mrb[0].mxu0
  %v1327 = vadd.f32 %v1206, %v1326
  %v1328 = vpop.f32.mrb[0].mxu0
  %v1329 = vpop.f32.mrb[0].mxu0
  %v1330 = vadd.f32 %v1206, %v1329
  %v1331 = vpop.f32.mrb[0].mxu0
  %1332 = vmatprep.mubr.bf16.mxu0 0
  %1333 = vmatmul.mubr.bf16.gmra.mrb[0].mxu0 %v303
  %v1334 = vpop.f32.mrb[0].mxu0
  %v1335 = vadd.f32 %v1206, %v1334
  %v1336 = vpop.f32.mrb[0].mxu0
  %v1337 = vpop.f32.mrb[0].mxu0
  %v1338 = vadd.f32 %v1206, %v1337
  %v1339 = vpop.f32.mrb[0].mxu0
  %1340 = vmatprep.mubr.bf16.mxu0 0
  %1341 = vmatmul.mubr.bf16.gmra.mrb[0].mxu0 %v306
  %v1342 = vpop.f32.mrb[0].mxu0
  %v1343 = vadd.f32 %v1206, %v1342
  %v1344 = vpop.f32.mrb[0].mxu0
  %v1345 = vpop.f32.mrb[0].mxu0
  %v1346 = vadd.f32 %v1206, %v1345
  %v1347 = vpop.f32.mrb[0].mxu0
  %1348 = vmatprep.mubr.bf16.mxu0 0
  %1349 = vmatmul.mubr.bf16.gmra.mrb[0].mxu0 %v309
  %v1350 = vpop.f32.mrb[0].mxu0
  %v1351 = vadd.f32 %v1206, %v1350
  %v1352 = vpop.f32.mrb[0].mxu0
  %v1353 = vpop.f32.mrb[0].mxu0
  %v1354 = vadd.f32 %v1206, %v1353
  %v1355 = vpop.f32.mrb[0].mxu0
  %1356 = vmatprep.mubr.bf16.mxu0 0
  %1357 = vmatmul.mubr.bf16.gmra.mrb[0].mxu0 %v312
  %v1358 = vpop.f32.mrb[0].mxu0
  %v1359 = vadd.f32 %v1206, %v1358
  %v1360 = vpop.f32.mrb[0].mxu0
  %v1361 = vpop.f32.mrb[0].mxu0
  %v1362 = vadd.f32 %v1206, %v1361
  %v1363 = vpop.f32.mrb[0].mxu0
  %1364 = vmatprep.mubr.bf16.mxu0 0
  %1365 = vmatmul.mubr.bf16.gmra.mrb[0].mxu0 %v315
  %v1366 = vpop.f32.mrb[0].mxu0
  %v1367 = vadd.f32 %v1206, %v1366
  %v1368 = vpop.f32.mrb[0].mxu0
  %v1369 = vpop.f32.mrb[0].mxu0
  %v1370 = vadd.f32 %v1206, %v1369
  %v1371 = vpop.f32.mrb[0].mxu0
  %1372 = vmatprep.mubr.bf16.mxu0 0
  %1373 = vmatmul.mubr.bf16.gmra.mrb[0].mxu0 %v318
  %v1374 = vpop.f32.mrb[0].mxu0
  %v1375 = vadd.f32 %v1206, %v1374
  %v1376 = vpop.f32.mrb[0].mxu0
  %v1377 = vpop.f32.mrb[0].mxu0
  %v1378 = vadd.f32 %v1206, %v1377
  %v1379 = vpop.f32.mrb[0].mxu0
  %1380 = vmatprep.mubr.bf16.mxu0 0
  %1381 = vmatmul.mubr.bf16.gmra.mrb[0].mxu0 %v321
  %v1382 = vpop.f32.mrb[0].mxu0
  %v1383 = vadd.f32 %v1206, %v1382
  %v1384 = vpop.f32.mrb[0].mxu0
  %v1385 = vpop.f32.mrb[0].mxu0
  %v1386 = vadd.f32 %v1206, %v1385
  %v1387 = vpop.f32.mrb[0].mxu0
  %1388 = vmatprep.mubr.bf16.mxu0 0
  %1389 = vmatmul.mubr.bf16.gmra.mrb[0].mxu0 %v324
  %v1390 = vpop.f32.mrb[0].mxu0
  %v1391 = vadd.f32 %v1206, %v1390
  %v1392 = vpop.f32.mrb[0].mxu0
  %v1393 = vpop.f32.mrb[0].mxu0
  %v1394 = vadd.f32 %v1206, %v1393
  %v1395 = vpop.f32.mrb[0].mxu0
  %1396 = vmatprep.mubr.bf16.mxu0 0
  %1397 = vmatmul.mubr.bf16.gmra.mrb[0].mxu0 %v327
  %v1398 = vpop.f32.mrb[0].mxu0
  %v1399 = vadd.f32 %v1206, %v1398
  %v1400 = vpop.f32.mrb[0].mxu0
  %v1401 = vpop.f32.mrb[0].mxu0
  %v1402 = vadd.f32 %v1206, %v1401
  %v1403 = vpop.f32.mrb[0].mxu0
  %1404 = vmatprep.mubr.bf16.mxu0 0
  %1405 = vmatmul.mubr.bf16.gmra.mrb[0].mxu0 %v330
  %v1406 = vpop.f32.mrb[0].mxu0
  %v1407 = vadd.f32 %v1206, %v1406
  %v1408 = vpop.f32.mrb[0].mxu0
  %v1409 = vpop.f32.mrb[0].mxu0
  %v1410 = vadd.f32 %v1206, %v1409
  %v1411 = vpop.f32.mrb[0].mxu0
  %1412 = vmatprep.mubr.bf16.mxu0 0
  %1413 = vmatmul.mubr.bf16.gmra.mrb[0].mxu0 %v333
  %v1414 = vpop.f32.mrb[0].mxu0
  %v1415 = vadd.f32 %v1206, %v1414
  %v1416 = vpop.f32.mrb[0].mxu0
  %v1417 = vpop.f32.mrb[0].mxu0
  %v1418 = vadd.f32 %v1206, %v1417
  %v1419 = vpop.f32.mrb[0].mxu0
  %1420 = vmatprep.mubr.bf16.mxu0 0
  %1421 = vmatmul.mubr.bf16.gmra.mrb[0].mxu0 %v336
  %v1422 = vpop.f32.mrb[0].mxu0
  %v1423 = vadd.f32 %v1206, %v1422
  %v1424 = vpop.f32.mrb[0].mxu0
  %v1425 = vpop.f32.mrb[0].mxu0
  %v1426 = vadd.f32 %v1206, %v1425
  %v1427 = vpop.f32.mrb[0].mxu0
  %1428 = vmatprep.mubr.bf16.mxu0 0
  %1429 = vmatmul.mubr.bf16.gmra.mrb[0].mxu0 %v339
  %v1430 = vpop.f32.mrb[0].mxu0
  %v1431 = vadd.f32 %v1206, %v1430
  %v1432 = vpop.f32.mrb[0].mxu0
  %v1433 = vpop.f32.mrb[0].mxu0
  %v1434 = vadd.f32 %v1206, %v1433
  %v1435 = vpop.f32.mrb[0].mxu0
  %1436 = vmatprep.mubr.bf16.mxu0 0
  %1437 = vmatmul.mubr.bf16.gmra.mrb[0].mxu0 %v342
  %v1438 = vpop.f32.mrb[0].mxu0
  %v1439 = vadd.f32 %v1206, %v1438
  %v1440 = vpop.f32.mrb[0].mxu0
  %v1441 = vpop.f32.mrb[0].mxu0
  %v1442 = vadd.f32 %v1206, %v1441
  %v1443 = vpop.f32.mrb[0].mxu0
  %1444 = vmatprep.mubr.bf16.mxu0 0
  %1445 = vmatmul.mubr.bf16.gmra.mrb[0].mxu0 %v345
  %v1446 = vpop.f32.mrb[0].mxu0
  %v1447 = vadd.f32 %v1206, %v1446
  %v1448 = vpop.f32.mrb[0].mxu0
  %v1449 = vpop.f32.mrb[0].mxu0
  %v1450 = vadd.f32 %v1206, %v1449
  %v1451 = vpop.f32.mrb[0].mxu0
  %1452 = vmatprep.mubr.bf16.mxu0 0
  %1453 = vmatmul.mubr.bf16.gmra.mrb[0].mxu0 %v348
  %v1454 = vpop.f32.mrb[0].mxu0
  %v1455 = vadd.f32 %v1206, %v1454
  %v1456 = vpop.f32.mrb[0].mxu0
  %v1457 = vpop.f32.mrb[0].mxu0
  %v1458 = vadd.f32 %v1206, %v1457
  %v1459 = vpop.f32.mrb[0].mxu0
  %1460 = vmatprep.mubr.bf16.mxu0 0
  %1461 = vmatmul.mubr.bf16.gmra.mrb[0].mxu0 %v351
  %v1462 = vpop.f32.mrb[0].mxu0
  %v1463 = vadd.f32 %v1206, %v1462
  %v1464 = vpop.f32.mrb[0].mxu0
  %v1465 = vpop.f32.mrb[0].mxu0
  %v1466 = vadd.f32 %v1206, %v1465
  %v1467 = vpop.f32.mrb[0].mxu0
  %1468 = vmatprep.mubr.bf16.mxu0 0
  %1469 = vmatmul.mubr.bf16.gmra.mrb[0].mxu0 %v354
  %v1470 = vpop.f32.mrb[0].mxu0
  %v1471 = vadd.f32 %v1206, %v1470
  %v1472 = vpop.f32.mrb[0].mxu0
  %v1473 = vpop.f32.mrb[0].mxu0
  %v1474 = vadd.f32 %v1206, %v1473
  %v1475 = vpop.f32.mrb[0].mxu0
  %1476 = vmatprep.mubr.bf16.mxu0 0
  %1477 = vmatmul.mubr.bf16.gmra.mrb[0].mxu0 %v357
  %v1478 = vpop.f32.mrb[0].mxu0
  %v1479 = vadd.f32 %v1206, %v1478
  %v1480 = vpop.f32.mrb[0].mxu0
  %v1481 = vpop.f32.mrb[0].mxu0
  %v1482 = vadd.f32 %v1206, %v1481
  %v1483 = vpop.f32.mrb[0].mxu0
  %1484 = vmatprep.mubr.bf16.mxu0 0
  %1485 = vmatmul.mubr.bf16.gmra.mrb[0].mxu0 %v360
  %v1486 = vpop.f32.mrb[0].mxu0
  %v1487 = vadd.f32 %v1206, %v1486
  %v1488 = vpop.f32.mrb[0].mxu0
  %v1489 = vpop.f32.mrb[0].mxu0
  %v1490 = vadd.f32 %v1206, %v1489
  %v1491 = vpop.f32.mrb[0].mxu0
  %1492 = vmatprep.mubr.bf16.mxu0 0
  %1493 = vmatmul.mubr.bf16.gmra.mrb[0].mxu0 %v363
  %v1494 = vpop.f32.mrb[0].mxu0
  %v1495 = vadd.f32 %v1206, %v1494
  %v1496 = vpop.f32.mrb[0].mxu0
  %v1497 = vpop.f32.mrb[0].mxu0
  %v1498 = vadd.f32 %v1206, %v1497
  %v1499 = vpop.f32.mrb[0].mxu0
  %1500 = vmatprep.mubr.bf16.mxu0 0
  %1501 = vmatmul.mubr.bf16.gmra.mrb[0].mxu0 %v366
  %v1502 = vpop.f32.mrb[0].mxu0
  %v1503 = vadd.f32 %v1206, %v1502
  %v1504 = vpop.f32.mrb[0].mxu0
  %v1505 = vpop.f32.mrb[0].mxu0
  %v1506 = vadd.f32 %v1206, %v1505
  %v1507 = vpop.f32.mrb[0].mxu0
  %1508 = vdwg.mxu0
  %v1509 = vmul.f32 %v879, %v1255
  %v1510 = vmul.f32 %v884, %v1258
  %v1511 = vmul.f32 %v889, %v1263
  %v1512 = vmul.f32 %v894, %v1266
  %v1513 = vmul.f32 %v899, %v1271
  %v1514 = vmul.f32 %v904, %v1274
  %v1515 = vmul.f32 %v909, %v1279
  %v1516 = vmul.f32 %v914, %v1282
  %v1517 = vmul.f32 %v919, %v1287
  %v1518 = vmul.f32 %v924, %v1290
  %v1519 = vmul.f32 %v929, %v1295
  %v1520 = vmul.f32 %v934, %v1298
  %v1521 = vmul.f32 %v939, %v1303
  %v1522 = vmul.f32 %v944, %v1306
  %v1523 = vmul.f32 %v949, %v1311
  %v1524 = vmul.f32 %v954, %v1314
  %v1525 = vmul.f32 %v959, %v1319
  %v1526 = vmul.f32 %v964, %v1322
  %v1527 = vmul.f32 %v969, %v1327
  %v1528 = vmul.f32 %v974, %v1330
  %v1529 = vmul.f32 %v979, %v1335
  %v1530 = vmul.f32 %v984, %v1338
  %v1531 = vmul.f32 %v989, %v1343
  %v1532 = vmul.f32 %v994, %v1346
  %v1533 = vmul.f32 %v999, %v1351
  %v1534 = vmul.f32 %v1004, %v1354
  %v1535 = vmul.f32 %v1009, %v1359
  %v1536 = vmul.f32 %v1014, %v1362
  %v1537 = vmul.f32 %v1019, %v1367
  %v1538 = vmul.f32 %v1024, %v1370
  %v1539 = vmul.f32 %v1029, %v1375
  %v1540 = vmul.f32 %v1034, %v1378
  %v1541 = vmul.f32 %v1039, %v1383
  %v1542 = vmul.f32 %v1044, %v1386
  %v1543 = vmul.f32 %v1049, %v1391
  %v1544 = vmul.f32 %v1054, %v1394
  %v1545 = vmul.f32 %v1059, %v1399
  %v1546 = vmul.f32 %v1064, %v1402
  %v1547 = vmul.f32 %v1069, %v1407
  %v1548 = vmul.f32 %v1074, %v1410
  %v1549 = vmul.f32 %v1079, %v1415
  %v1550 = vmul.f32 %v1084, %v1418
  %v1551 = vmul.f32 %v1089, %v1423
  %v1552 = vmul.f32 %v1094, %v1426
  %v1553 = vmul.f32 %v1099, %v1431
  %v1554 = vmul.f32 %v1104, %v1434
  %v1555 = vmul.f32 %v1109, %v1439
  %v1556 = vmul.f32 %v1114, %v1442
  %v1557 = vmul.f32 %v1119, %v1447
  %v1558 = vmul.f32 %v1124, %v1450
  %v1559 = vmul.f32 %v1129, %v1455
  %v1560 = vmul.f32 %v1134, %v1458
  %v1561 = vmul.f32 %v1139, %v1463
  %v1562 = vmul.f32 %v1144, %v1466
  %v1563 = vmul.f32 %v1149, %v1471
  %v1564 = vmul.f32 %v1154, %v1474
  %v1565 = vmul.f32 %v1159, %v1479
  %v1566 = vmul.f32 %v1164, %v1482
  %v1567 = vmul.f32 %v1169, %v1487
  %v1568 = vmul.f32 %v1174, %v1490
  %v1569 = vmul.f32 %v1179, %v1495
  %v1570 = vmul.f32 %v1184, %v1498
  %v1571 = vmul.f32 %v1189, %v1503
  %v1572 = vmul.f32 %v1194, %v1506
  %v1573 = vunpack.c.l.bf16 %v21
  %v1574 = vunpack.c.l.bf16 %v22
  %v1575 = vunpack.c.l.bf16 %v23
  %v1576 = vunpack.c.l.bf16 %v24
  %v1577 = vunpack.c.l.bf16 %v25
  %v1578 = vunpack.c.l.bf16 %v26
  %v1579 = vunpack.c.l.bf16 %v27
  %v1580 = vunpack.c.l.bf16 %v28
  %v1581 = vunpack.c.l.bf16 %v29
  %v1582 = vunpack.c.l.bf16 %v30
  %v1583 = vunpack.c.l.bf16 %v31
  %v1584 = vunpack.c.l.bf16 %v32
  %v1585 = vunpack.c.l.bf16 %v33
  %v1586 = vunpack.c.l.bf16 %v34
  %v1587 = vunpack.c.l.bf16 %v35
  %v1588 = vunpack.c.l.bf16 %v36
  %v1589 = vunpack.c.l.bf16 %v37
  %v1590 = vunpack.c.l.bf16 %v38
  %v1591 = vunpack.c.l.bf16 %v39
  %v1592 = vunpack.c.l.bf16 %v40
  %v1593 = vunpack.c.l.bf16 %v41
  %v1594 = vunpack.c.l.bf16 %v42
  %v1595 = vunpack.c.l.bf16 %v43
  %v1596 = vunpack.c.l.bf16 %v44
  %v1597 = vunpack.c.l.bf16 %v45
  %v1598 = vunpack.c.l.bf16 %v46
  %v1599 = vunpack.c.l.bf16 %v47
  %v1600 = vunpack.c.l.bf16 %v48
  %v1601 = vunpack.c.l.bf16 %v49
  %v1602 = vunpack.c.l.bf16 %v50
  %v1603 = vunpack.c.l.bf16 %v51
  %v1604 = vunpack.c.l.bf16 %v52
  %v1605 = vunpack.c.l.bf16 %v53
  %v1606 = vunpack.c.l.bf16 %v54
  %v1607 = vunpack.c.l.bf16 %v55
  %v1608 = vunpack.c.l.bf16 %v56
  %v1609 = vunpack.c.l.bf16 %v57
  %v1610 = vunpack.c.l.bf16 %v58
  %v1611 = vunpack.c.l.bf16 %v59
  %v1612 = vunpack.c.l.bf16 %v60
  %v1613 = vunpack.c.l.bf16 %v61
  %v1614 = vunpack.c.l.bf16 %v62
  %v1615 = vunpack.c.l.bf16 %v63
  %v1616 = vunpack.c.l.bf16 %v64
  %v1617 = vunpack.c.l.bf16 %v65
  %v1618 = vunpack.c.l.bf16 %v66
  %v1619 = vunpack.c.l.bf16 %v67
  %v1620 = vunpack.c.l.bf16 %v68
  %v1621 = vunpack.c.l.bf16 %v69
  %v1622 = vunpack.c.l.bf16 %v70
  %v1623 = vunpack.c.l.bf16 %v71
  %v1624 = vunpack.c.l.bf16 %v72
  %v1625 = vunpack.c.l.bf16 %v73
  %v1626 = vunpack.c.l.bf16 %v74
  %v1627 = vunpack.c.l.bf16 %v75
  %v1628 = vunpack.c.l.bf16 %v76
  %v1629 = vunpack.c.l.bf16 %v77
  %v1630 = vunpack.c.l.bf16 %v78
  %v1631 = vunpack.c.l.bf16 %v79
  %v1632 = vunpack.c.l.bf16 %v80
  %v1633 = vunpack.c.l.bf16 %v81
  %v1634 = vunpack.c.l.bf16 %v82
  %v1635 = vunpack.c.l.bf16 %v83
  %v1636 = vunpack.c.l.bf16 %v84
  %v1637 = vadd.f32 %v1509, %v1573
  %v1638 = vadd.f32 %v1510, %v1574
  %v1639 = vadd.f32 %v1511, %v1575
  %v1640 = vadd.f32 %v1512, %v1576
  %v1641 = vadd.f32 %v1513, %v1577
  %v1642 = vadd.f32 %v1514, %v1578
  %v1643 = vadd.f32 %v1515, %v1579
  %v1644 = vadd.f32 %v1516, %v1580
  %v1645 = vadd.f32 %v1517, %v1581
  %v1646 = vadd.f32 %v1518, %v1582
  %v1647 = vadd.f32 %v1519, %v1583
  %v1648 = vadd.f32 %v1520, %v1584
  %v1649 = vadd.f32 %v1521, %v1585
  %v1650 = vadd.f32 %v1522, %v1586
  %v1651 = vadd.f32 %v1523, %v1587
  %v1652 = vadd.f32 %v1524, %v1588
  %v1653 = vadd.f32 %v1525, %v1589
  %v1654 = vadd.f32 %v1526, %v1590
  %v1655 = vadd.f32 %v1527, %v1591
  %v1656 = vadd.f32 %v1528, %v1592
  %v1657 = vadd.f32 %v1529, %v1593
  %v1658 = vadd.f32 %v1530, %v1594
  %v1659 = vadd.f32 %v1531, %v1595
  %v1660 = vadd.f32 %v1532, %v1596
  %v1661 = vadd.f32 %v1533, %v1597
  %v1662 = vadd.f32 %v1534, %v1598
  %v1663 = vadd.f32 %v1535, %v1599
  %v1664 = vadd.f32 %v1536, %v1600
  %v1665 = vadd.f32 %v1537, %v1601
  %v1666 = vadd.f32 %v1538, %v1602
  %v1667 = vadd.f32 %v1539, %v1603
  %v1668 = vadd.f32 %v1540, %v1604
  %v1669 = vadd.f32 %v1541, %v1605
  %v1670 = vadd.f32 %v1542, %v1606
  %v1671 = vadd.f32 %v1543, %v1607
  %v1672 = vadd.f32 %v1544, %v1608
  %v1673 = vadd.f32 %v1545, %v1609
  %v1674 = vadd.f32 %v1546, %v1610
  %v1675 = vadd.f32 %v1547, %v1611
  %v1676 = vadd.f32 %v1548, %v1612
  %v1677 = vadd.f32 %v1549, %v1613
  %v1678 = vadd.f32 %v1550, %v1614
  %v1679 = vadd.f32 %v1551, %v1615
  %v1680 = vadd.f32 %v1552, %v1616
  %v1681 = vadd.f32 %v1553, %v1617
  %v1682 = vadd.f32 %v1554, %v1618
  %v1683 = vadd.f32 %v1555, %v1619
  %v1684 = vadd.f32 %v1556, %v1620
  %v1685 = vadd.f32 %v1557, %v1621
  %v1686 = vadd.f32 %v1558, %v1622
  %v1687 = vadd.f32 %v1559, %v1623
  %v1688 = vadd.f32 %v1560, %v1624
  %v1689 = vadd.f32 %v1561, %v1625
  %v1690 = vadd.f32 %v1562, %v1626
  %v1691 = vadd.f32 %v1563, %v1627
  %v1692 = vadd.f32 %v1564, %v1628
  %v1693 = vadd.f32 %v1565, %v1629
  %v1694 = vadd.f32 %v1566, %v1630
  %v1695 = vadd.f32 %v1567, %v1631
  %v1696 = vadd.f32 %v1568, %v1632
  %v1697 = vadd.f32 %v1569, %v1633
  %v1698 = vadd.f32 %v1570, %v1634
  %v1699 = vadd.f32 %v1571, %v1635
  %v1700 = vadd.f32 %v1572, %v1636
  %v1701 = vpack.c.bf16 %v1638, %v1637
  %v1702 = vpack.c.bf16 %v1640, %v1639
  %v1703 = vpack.c.bf16 %v1642, %v1641
  %v1704 = vpack.c.bf16 %v1644, %v1643
  %v1705 = vpack.c.bf16 %v1646, %v1645
  %v1706 = vpack.c.bf16 %v1648, %v1647
  %v1707 = vpack.c.bf16 %v1650, %v1649
  %v1708 = vpack.c.bf16 %v1652, %v1651
  %v1709 = vpack.c.bf16 %v1654, %v1653
  %v1710 = vpack.c.bf16 %v1656, %v1655
  %v1711 = vpack.c.bf16 %v1658, %v1657
  %v1712 = vpack.c.bf16 %v1660, %v1659
  %v1713 = vpack.c.bf16 %v1662, %v1661
  %v1714 = vpack.c.bf16 %v1664, %v1663
  %v1715 = vpack.c.bf16 %v1666, %v1665
  %v1716 = vpack.c.bf16 %v1668, %v1667
  %v1717 = vpack.c.bf16 %v1670, %v1669
  %v1718 = vpack.c.bf16 %v1672, %v1671
  %v1719 = vpack.c.bf16 %v1674, %v1673
  %v1720 = vpack.c.bf16 %v1676, %v1675
  %v1721 = vpack.c.bf16 %v1678, %v1677
  %v1722 = vpack.c.bf16 %v1680, %v1679
  %v1723 = vpack.c.bf16 %v1682, %v1681
  %v1724 = vpack.c.bf16 %v1684, %v1683
  %v1725 = vpack.c.bf16 %v1686, %v1685
  %v1726 = vpack.c.bf16 %v1688, %v1687
  %v1727 = vpack.c.bf16 %v1690, %v1689
  %v1728 = vpack.c.bf16 %v1692, %v1691
  %v1729 = vpack.c.bf16 %v1694, %v1693
  %v1730 = vpack.c.bf16 %v1696, %v1695
  %v1731 = vpack.c.bf16 %v1698, %v1697
  %v1732 = vpack.c.bf16 %v1700, %v1699
  %v1765 = vunpack.c.l.b16 %v1701
  %v1766 = vunpack.c.h.b16 %v1701
  %v1767 = vunpack.c.l.b16 %v1702
  %v1768 = vunpack.c.h.b16 %v1702
  %v1769 = vunpack.c.l.b16 %v1703
  %v1770 = vunpack.c.h.b16 %v1703
  %v1771 = vunpack.c.l.b16 %v1704
  %v1772 = vunpack.c.h.b16 %v1704
  %v1773 = vunpack.c.l.b16 %v1705
  %v1774 = vunpack.c.h.b16 %v1705
  %v1775 = vunpack.c.l.b16 %v1706
  %v1776 = vunpack.c.h.b16 %v1706
  %v1777 = vunpack.c.l.b16 %v1707
  %v1778 = vunpack.c.h.b16 %v1707
  %v1779 = vunpack.c.l.b16 %v1708
  %v1780 = vunpack.c.h.b16 %v1708
  %v1781 = vunpack.c.l.b16 %v1709
  %v1782 = vunpack.c.h.b16 %v1709
  %v1783 = vunpack.c.l.b16 %v1710
  %v1784 = vunpack.c.h.b16 %v1710
  %v1785 = vunpack.c.l.b16 %v1711
  %v1786 = vunpack.c.h.b16 %v1711
  %v1787 = vunpack.c.l.b16 %v1712
  %v1788 = vunpack.c.h.b16 %v1712
  %v1789 = vunpack.c.l.b16 %v1713
  %v1790 = vunpack.c.h.b16 %v1713
  %v1791 = vunpack.c.l.b16 %v1714
  %v1792 = vunpack.c.h.b16 %v1714
  %v1793 = vunpack.c.l.b16 %v1715
  %v1794 = vunpack.c.h.b16 %v1715
  %v1795 = vunpack.c.l.b16 %v1716
  %v1796 = vunpack.c.h.b16 %v1716
  %v1797 = vunpack.c.l.b16 %v1717
  %v1798 = vunpack.c.h.b16 %v1717
  %v1799 = vunpack.c.l.b16 %v1718
  %v1800 = vunpack.c.h.b16 %v1718
  %v1801 = vunpack.c.l.b16 %v1719
  %v1802 = vunpack.c.h.b16 %v1719
  %v1803 = vunpack.c.l.b16 %v1720
  %v1804 = vunpack.c.h.b16 %v1720
  %v1805 = vunpack.c.l.b16 %v1721
  %v1806 = vunpack.c.h.b16 %v1721
  %v1807 = vunpack.c.l.b16 %v1722
  %v1808 = vunpack.c.h.b16 %v1722
  %v1809 = vunpack.c.l.b16 %v1723
  %v1810 = vunpack.c.h.b16 %v1723
  %v1811 = vunpack.c.l.b16 %v1724
  %v1812 = vunpack.c.h.b16 %v1724
  %v1813 = vunpack.c.l.b16 %v1725
  %v1814 = vunpack.c.h.b16 %v1725
  %v1815 = vunpack.c.l.b16 %v1726
  %v1816 = vunpack.c.h.b16 %v1726
  %v1817 = vunpack.c.l.b16 %v1727
  %v1818 = vunpack.c.h.b16 %v1727
  %v1819 = vunpack.c.l.b16 %v1728
  %v1820 = vunpack.c.h.b16 %v1728
  %v1821 = vunpack.c.l.b16 %v1729
  %v1822 = vunpack.c.h.b16 %v1729
  %v1823 = vunpack.c.l.b16 %v1730
  %v1824 = vunpack.c.h.b16 %v1730
  %v1825 = vunpack.c.l.b16 %v1731
  %v1826 = vunpack.c.h.b16 %v1731
  %v1827 = vunpack.c.l.b16 %v1732
  %v1828 = vunpack.c.h.b16 %v1732
  %v1829 = vpack.c.b16 %v1765, %v1765
  %v1830 = vpack.c.b16 %v1766, %v1766
  %v1831 = vpack.c.b16 %v1767, %v1767
  %v1832 = vpack.c.b16 %v1768, %v1768
  %v1833 = vpack.c.b16 %v1769, %v1769
  %v1834 = vpack.c.b16 %v1770, %v1770
  %v1835 = vpack.c.b16 %v1771, %v1771
  %v1836 = vpack.c.b16 %v1772, %v1772
  %v1837 = vpack.c.b16 %v1773, %v1773
  %v1838 = vpack.c.b16 %v1774, %v1774
  %v1839 = vpack.c.b16 %v1775, %v1775
  %v1840 = vpack.c.b16 %v1776, %v1776
  %v1841 = vpack.c.b16 %v1777, %v1777
  %v1842 = vpack.c.b16 %v1778, %v1778
  %v1843 = vpack.c.b16 %v1779, %v1779
  %v1844 = vpack.c.b16 %v1780, %v1780
  %v1845 = vpack.c.b16 %v1781, %v1781
  %v1846 = vpack.c.b16 %v1782, %v1782
  %v1847 = vpack.c.b16 %v1783, %v1783
  %v1848 = vpack.c.b16 %v1784, %v1784
  %v1849 = vpack.c.b16 %v1785, %v1785
  %v1850 = vpack.c.b16 %v1786, %v1786
  %v1851 = vpack.c.b16 %v1787, %v1787
  %v1852 = vpack.c.b16 %v1788, %v1788
  %v1853 = vpack.c.b16 %v1789, %v1789
  %v1854 = vpack.c.b16 %v1790, %v1790
  %v1855 = vpack.c.b16 %v1791, %v1791
  %v1856 = vpack.c.b16 %v1792, %v1792
  %v1857 = vpack.c.b16 %v1793, %v1793
  %v1858 = vpack.c.b16 %v1794, %v1794
  %v1859 = vpack.c.b16 %v1795, %v1795
  %v1860 = vpack.c.b16 %v1796, %v1796
  %v1861 = vpack.c.b16 %v1797, %v1797
  %v1862 = vpack.c.b16 %v1798, %v1798
  %v1863 = vpack.c.b16 %v1799, %v1799
  %v1864 = vpack.c.b16 %v1800, %v1800
  %v1865 = vpack.c.b16 %v1801, %v1801
  %v1866 = vpack.c.b16 %v1802, %v1802
  %v1867 = vpack.c.b16 %v1803, %v1803
  %v1868 = vpack.c.b16 %v1804, %v1804
  %v1869 = vpack.c.b16 %v1805, %v1805
  %v1870 = vpack.c.b16 %v1806, %v1806
  %v1871 = vpack.c.b16 %v1807, %v1807
  %v1872 = vpack.c.b16 %v1808, %v1808
  %v1873 = vpack.c.b16 %v1809, %v1809
  %v1874 = vpack.c.b16 %v1810, %v1810
  %v1875 = vpack.c.b16 %v1811, %v1811
  %v1876 = vpack.c.b16 %v1812, %v1812
  %v1877 = vpack.c.b16 %v1813, %v1813
  %v1878 = vpack.c.b16 %v1814, %v1814
  %v1879 = vpack.c.b16 %v1815, %v1815
  %v1880 = vpack.c.b16 %v1816, %v1816
  %v1881 = vpack.c.b16 %v1817, %v1817
  %v1882 = vpack.c.b16 %v1818, %v1818
  %v1883 = vpack.c.b16 %v1819, %v1819
  %v1884 = vpack.c.b16 %v1820, %v1820
  %v1885 = vpack.c.b16 %v1821, %v1821
  %v1886 = vpack.c.b16 %v1822, %v1822
  %v1887 = vpack.c.b16 %v1823, %v1823
  %v1888 = vpack.c.b16 %v1824, %v1824
  %v1889 = vpack.c.b16 %v1825, %v1825
  %v1890 = vpack.c.b16 %v1826, %v1826
  %v1891 = vpack.c.b16 %v1827, %v1827
  %v1892 = vpack.c.b16 %v1828, %v1828
  %vm1957 = vcmask 257024
  %1958 = vst.msk [vmem:[%s5] sm:$0xf] %vm1957, %v1829
  %1959 = vst.msk [vmem:[%s5 + $0x4] sm:$0xf] %vm1957, %v1830
  %1960 = vst.msk [vmem:[%s5 + $0x8] sm:$0xf] %vm1957, %v1831
  %1961 = vst.msk [vmem:[%s5 + $0xc] sm:$0xf] %vm1957, %v1832
  %1962 = vst.msk [vmem:[%s5 + $0x10] sm:$0xf] %vm1957, %v1833
  %1963 = vst.msk [vmem:[%s5 + $0x14] sm:$0xf] %vm1957, %v1834
  %1964 = vst.msk [vmem:[%s5 + $0x18] sm:$0xf] %vm1957, %v1835
  %1965 = vst.msk [vmem:[%s5 + $0x1c] sm:$0xf] %vm1957, %v1836
  %1966 = vst.msk [vmem:[%s5 + $0x20] sm:$0xf] %vm1957, %v1837
  %1967 = vst.msk [vmem:[%s5 + $0x24] sm:$0xf] %vm1957, %v1838
  %1968 = vst.msk [vmem:[%s5 + $0x28] sm:$0xf] %vm1957, %v1839
  %1969 = vst.msk [vmem:[%s5 + $0x2c] sm:$0xf] %vm1957, %v1840
  %1970 = vst.msk [vmem:[%s5 + $0x30] sm:$0xf] %vm1957, %v1841
  %1971 = vst.msk [vmem:[%s5 + $0x34] sm:$0xf] %vm1957, %v1842
  %1972 = vst.msk [vmem:[%s5 + $0x38] sm:$0xf] %vm1957, %v1843
  %1973 = vst.msk [vmem:[%s5 + $0x3c] sm:$0xf] %vm1957, %v1844
  %1974 = vst.msk [vmem:[%s5 + $0x40] sm:$0xf] %vm1957, %v1845
  %1975 = vst.msk [vmem:[%s5 + $0x44] sm:$0xf] %vm1957, %v1846
  %1976 = vst.msk [vmem:[%s5 + $0x48] sm:$0xf] %vm1957, %v1847
  %1977 = vst.msk [vmem:[%s5 + $0x4c] sm:$0xf] %vm1957, %v1848
  %1978 = vst.msk [vmem:[%s5 + $0x50] sm:$0xf] %vm1957, %v1849
  %1979 = vst.msk [vmem:[%s5 + $0x54] sm:$0xf] %vm1957, %v1850
  %1980 = vst.msk [vmem:[%s5 + $0x58] sm:$0xf] %vm1957, %v1851
  %1981 = vst.msk [vmem:[%s5 + $0x5c] sm:$0xf] %vm1957, %v1852
  %1982 = vst.msk [vmem:[%s5 + $0x60] sm:$0xf] %vm1957, %v1853
  %1983 = vst.msk [vmem:[%s5 + $0x64] sm:$0xf] %vm1957, %v1854
  %1984 = vst.msk [vmem:[%s5 + $0x68] sm:$0xf] %vm1957, %v1855
  %1985 = vst.msk [vmem:[%s5 + $0x6c] sm:$0xf] %vm1957, %v1856
  %1986 = vst.msk [vmem:[%s5 + $0x70] sm:$0xf] %vm1957, %v1857
  %1987 = vst.msk [vmem:[%s5 + $0x74] sm:$0xf] %vm1957, %v1858
  %1988 = vst.msk [vmem:[%s5 + $0x78] sm:$0xf] %vm1957, %v1859
  %1989 = vst.msk [vmem:[%s5 + $0x7c] sm:$0xf] %vm1957, %v1860
  %1990 = vst.msk [vmem:[%s5 + $0x80] sm:$0xf] %vm1957, %v1861
  %1991 = vst.msk [vmem:[%s5 + $0x84] sm:$0xf] %vm1957, %v1862
  %1992 = vst.msk [vmem:[%s5 + $0x88] sm:$0xf] %vm1957, %v1863
  %1993 = vst.msk [vmem:[%s5 + $0x8c] sm:$0xf] %vm1957, %v1864
  %1994 = vst.msk [vmem:[%s5 + $0x90] sm:$0xf] %vm1957, %v1865
  %1995 = vst.msk [vmem:[%s5 + $0x94] sm:$0xf] %vm1957, %v1866
  %1996 = vst.msk [vmem:[%s5 + $0x98] sm:$0xf] %vm1957, %v1867
  %1997 = vst.msk [vmem:[%s5 + $0x9c] sm:$0xf] %vm1957, %v1868
  %1998 = vst.msk [vmem:[%s5 + $0xa0] sm:$0xf] %vm1957, %v1869
  %1999 = vst.msk [vmem:[%s5 + $0xa4] sm:$0xf] %vm1957, %v1870
  %2000 = vst.msk [vmem:[%s5 + $0xa8] sm:$0xf] %vm1957, %v1871
  %2001 = vst.msk [vmem:[%s5 + $0xac] sm:$0xf] %vm1957, %v1872
  %2002 = vst.msk [vmem:[%s5 + $0xb0] sm:$0xf] %vm1957, %v1873
  %2003 = vst.msk [vmem:[%s5 + $0xb4] sm:$0xf] %vm1957, %v1874
  %2004 = vst.msk [vmem:[%s5 + $0xb8] sm:$0xf] %vm1957, %v1875
  %2005 = vst.msk [vmem:[%s5 + $0xbc] sm:$0xf] %vm1957, %v1876
  %2006 = vst.msk [vmem:[%s5 + $0xc0] sm:$0xf] %vm1957, %v1877
  %2007 = vst.msk [vmem:[%s5 + $0xc4] sm:$0xf] %vm1957, %v1878
  %2008 = vst.msk [vmem:[%s5 + $0xc8] sm:$0xf] %vm1957, %v1879
  %2009 = vst.msk [vmem:[%s5 + $0xcc] sm:$0xf] %vm1957, %v1880
  %2010 = vst.msk [vmem:[%s5 + $0xd0] sm:$0xf] %vm1957, %v1881
  %2011 = vst.msk [vmem:[%s5 + $0xd4] sm:$0xf] %vm1957, %v1882
  %2012 = vst.msk [vmem:[%s5 + $0xd8] sm:$0xf] %vm1957, %v1883
  %2013 = vst.msk [vmem:[%s5 + $0xdc] sm:$0xf] %vm1957, %v1884
  %2014 = vst.msk [vmem:[%s5 + $0xe0] sm:$0xf] %vm1957, %v1885
  %2015 = vst.msk [vmem:[%s5 + $0xe4] sm:$0xf] %vm1957, %v1886
  %2016 = vst.msk [vmem:[%s5 + $0xe8] sm:$0xf] %vm1957, %v1887
  %2017 = vst.msk [vmem:[%s5 + $0xec] sm:$0xf] %vm1957, %v1888
  %2018 = vst.msk [vmem:[%s5 + $0xf0] sm:$0xf] %vm1957, %v1889
  %2019 = vst.msk [vmem:[%s5 + $0xf4] sm:$0xf] %vm1957, %v1890
  %2020 = vst.msk [vmem:[%s5 + $0xf8] sm:$0xf] %vm1957, %v1891
  %2021 = vst.msk [vmem:[%s5 + $0xfc] sm:$0xf] %vm1957, %v1892
  // Predicated region
  $region22: #{attention_layer_forward.1} parent=0 // pred_check
    _
  $region23: #{attention_layer_forward.1} parent=0 // pred_check_branch
    %2023 = sbr.rel (0) target = $region25
  $region24: #{attention_layer_forward.1} parent=0 // pred_region
    _
  $region25: #{attention_layer_forward.1} parent=0 // pred_fallthru
    _
  // Predicated region
  $region26: #{attention_layer_forward.1} parent=0 // pred_check
    _
  $region27: #{attention_layer_forward.1} parent=0 // pred_check_branch
    %2025 = sbr.rel (0) target = $region29
  $region28: #{attention_layer_forward.1} parent=0 // pred_region
    _
  $region29: #{attention_layer_forward.1} parent=0 // pred_fallthru
    _

</llo_original>
